<compile_context>
chip_gen: v6e
topology: v6e:2x2x1
jax: 0.10.0
libtpu: 0.0.40
codegen_flags: <defaults>
</compile_context>

<pallas_src>
import functools

import jax
import jax.numpy as jnp
from jax.experimental import pallas as pl
from jax.experimental.pallas import tpu as pltpu


def _koopman_kernel(x_ref, a_ref,
                    we1_ref, be1_ref, we2_ref, be2_ref, we3_ref, be3_ref,
                    wdq_ref, wda_ref,
                    wd1_ref, bd1_ref, wd2_ref, bd2_ref, wd3_ref, bd3_ref,
                    out_ref):
    """Full koopmanAE forward for one batch tile (batch on lanes)."""
    x = x_ref[...]                                   # (N, T) f32

    # Load the (tiny) weights once; they are resident in VMEM for every step.
    we1, be1 = we1_ref[...], be1_ref[...]
    we2, be2 = we2_ref[...], be2_ref[...]
    we3, be3 = we3_ref[...], be3_ref[...]
    wdq, wda = wdq_ref[...], wda_ref[...]
    wd1, bd1 = wd1_ref[...], bd1_ref[...]
    wd2, bd2 = wd2_ref[...], bd2_ref[...]
    wd3, bd3 = wd3_ref[...], bd3_ref[...]

    # --- encoder: fc1-tanh, fc2-tanh, fc3 (no tanh) ---
    h = jnp.tanh(jnp.dot(we1, x, preferred_element_type=jnp.float32) + be1)
    h = jnp.tanh(jnp.dot(we2, h, preferred_element_type=jnp.float32) + be2)
    z = jnp.dot(we3, h, preferred_element_type=jnp.float32) + be3    # (b, T)

    # --- decoder: fc1-tanh, fc2-tanh, fc3-tanh ---
    def decode(q):
        d = jnp.tanh(jnp.dot(wd1, q, preferred_element_type=jnp.float32) + bd1)
        d = jnp.tanh(jnp.dot(wd2, d, preferred_element_type=jnp.float32) + bd2)
        d = jnp.tanh(jnp.dot(wd3, d, preferred_element_type=jnp.float32) + bd3)
        return d                                                     # (N, T)

    steps = a_ref.shape[0]
    q = z
    for s in range(steps):                          # static unroll; steps is small
        a_s = a_ref[s]                              # (action_dim, T)
        # dynamics(cat(q, a)) == Wq @ q + Wa @ a   (bias-free linear, split weight)
        q = (jnp.dot(wdq, q, preferred_element_type=jnp.float32)
             + jnp.dot(wda, a_s, preferred_element_type=jnp.float32))
        out_ref[s] = decode(q).astype(out_ref.dtype)
    out_ref[steps] = decode(z).astype(out_ref.dtype)


def koopman_ae_forward(state, actions, params, *, state_dim, action_dim, b,
                       steps, batch_tile=1024):
    """JAX wrapper matching koopmanAE.forward(state, actions, mode='forward').

    state:   anything that flattens to (B, state_dim)   (n == 1 in koopmanAE)
    actions: anything that reshapes to (steps, B, action_dim)
    Returns: (out, out_back) with out = list of steps+1 arrays of shape
             (B, 1, state_dim, 1), out_back = []  (same as the PyTorch module).
    """
    # TODO(synk): mode='backward' is not implemented — the reference module calls
    # self.backdynamics, which is not defined in the provided source.
    N = state_dim                                    # m*n with n == 1
    x2d = state.reshape(-1, N).astype(jnp.float32)   # (B, N)
    B = x2d.shape[0]
    a3d = actions.reshape(steps, -1, action_dim).astype(jnp.float32)  # (steps, B, A)

    (we1, be1, we2, be2, we3, be3, wdyn,
     wd1, bd1, wd2, bd2, wd3, bd3) = params
    hidden = we1.shape[0]
    wdq = wdyn[:, :b].astype(jnp.float32)            # (b, b)
    wda = wdyn[:, b:].astype(jnp.float32)            # (b, action_dim)

    # Batch-on-lanes layout: features on sublanes, batch on lanes.
    x_t = x2d.T                                      # (N, B)
    a_t = jnp.transpose(a3d, (0, 2, 1))              # (steps, action_dim, B)

    T = batch_tile if B > batch_tile else B          # lane tile (mult of 128 or full)
    grid = (pl.cdiv(B, T),)                          # no wrapper-side padding

    col = lambda v: v.reshape(-1, 1).astype(jnp.float32)
    wfull = lambda shp: pl.BlockSpec(shp, lambda i: (0, 0))

    out = pl.pallas_call(
        _koopman_kernel,
        out_shape=jax.ShapeDtypeStruct((steps + 1, N, B), jnp.float32),
        grid_spec=pltpu.PrefetchScalarGridSpec(
            num_scalar_prefetch=0,
            grid=grid,
            in_specs=[
                pl.BlockSpec((N, T), lambda i: (0, i)),                   # x (N, B)
                pl.BlockSpec((steps, action_dim, T), lambda i: (0, 0, i)),  # actions
                wfull((hidden, N)), wfull((hidden, 1)),                   # We1, be1
                wfull((hidden, hidden)), wfull((hidden, 1)),              # We2, be2
                wfull((b, hidden)), wfull((b, 1)),                        # We3, be3
                wfull((b, b)), wfull((b, action_dim)),                    # Wdq, Wda
                wfull((hidden, b)), wfull((hidden, 1)),                   # Wd1, bd1
                wfull((hidden, hidden)), wfull((hidden, 1)),              # Wd2, bd2
                wfull((N, hidden)), wfull((N, 1)),                        # Wd3, bd3
            ],
            out_specs=pl.BlockSpec((steps + 1, N, T), lambda i: (0, 0, i)),
        ),
        compiler_params=pltpu.CompilerParams(
            dimension_semantics=("parallel",)),
    )(x_t, a_t,
      we1.astype(jnp.float32), col(be1),
      we2.astype(jnp.float32), col(be2),
      we3.astype(jnp.float32), col(be3),
      wdq, wda,
      wd1.astype(jnp.float32), col(bd1),
      wd2.astype(jnp.float32), col(bd2),
      wd3.astype(jnp.float32), col(bd3))

    # (steps+1, N, B) -> list of (B, 1, state_dim, 1), matching PyTorch output.
    out_bnm = jnp.transpose(out, (0, 2, 1))          # (steps+1, B, N)
    outs = [out_bnm[s].reshape(B, 1, state_dim, 1) for s in range(steps + 1)]
    return outs, []


def init_koopman_params(key, state_dim, action_dim, b, alpha=1):
    """Xavier-normal weights (PyTorch (out, in) layout), zero biases."""
    hidden = 16 * alpha
    N = state_dim                                    # n == 1 in koopmanAE
    keys = jax.random.split(key, 7)

    def xavier(k, out_dim, in_dim):
        std = jnp.sqrt(2.0 / (in_dim + out_dim))
        return (std * jax.random.normal(k, (out_dim, in_dim))).astype(jnp.float32)

    we1 = xavier(keys[0], hidden, N)
    we2 = xavier(keys[1], hidden, hidden)
    we3 = xavier(keys[2], b, hidden)
    wdyn = xavier(keys[3], b, b + action_dim)        # dynamics.weight (no bias)
    wd1 = xavier(keys[4], hidden, b)
    wd2 = xavier(keys[5], hidden, hidden)
    wd3 = xavier(keys[6], N, hidden)
    zeros = lambda d: jnp.zeros((d,), jnp.float32)
    return (we1, zeros(hidden), we2, zeros(hidden), we3, zeros(b),
            wdyn,
            wd1, zeros(hidden), wd2, zeros(hidden), wd3, zeros(N))


def koopman_ae_reference(state, actions, params, *, state_dim, action_dim, b, steps):
    """Pure-JAX reference (mirrors the PyTorch module) for correctness checks."""
    (we1, be1, we2, be2, we3, be3, wdyn,
     wd1, bd1, wd2, bd2, wd3, bd3) = params
    x = state.reshape(-1, state_dim).astype(jnp.float32)
    h = jnp.tanh(x @ we1.T + be1)
    h = jnp.tanh(h @ we2.T + be2)
    z = h @ we3.T + be3

    def decode(q):
        d = jnp.tanh(q @ wd1.T + bd1)
        d = jnp.tanh(d @ wd2.T + bd2)
        d = jnp.tanh(d @ wd3.T + bd3)
        return d.reshape(-1, 1, state_dim, 1)

    out = []
    q = z
    for s in range(steps):
        a = actions[s].reshape(-1, action_dim)
        q = jnp.concatenate([q, a], axis=1) @ wdyn.T
        out.append(decode(q))
    out.append(decode(z))
    return out, []


if __name__ == "__main__":
    # Small shapes consistent with the module: state_dim=4 (N=4), action_dim=2,
    # latent b=8, alpha=1 (hidden=16), steps=3, batch=2.
    state_dim, action_dim, b, alpha, steps = 4, 2, 8, 1, 3
    batch = 2

    key = jax.random.PRNGKey(0)
    ks, ka, kp = jax.random.split(key, 3)
    state = jax.random.normal(ks, (batch, state_dim), dtype=jnp.float32)
    actions = jax.random.normal(ka, (steps, batch, action_dim), dtype=jnp.float32)
    params = init_koopman_params(kp, state_dim, action_dim, b, alpha)

    fwd = jax.jit(functools.partial(
        koopman_ae_forward, state_dim=state_dim, action_dim=action_dim,
        b=b, steps=steps))
    outs, out_back = fwd(state, actions, params)
    jax.block_until_ready(outs)

    ref_outs, _ = koopman_ae_reference(
        state, actions, params, state_dim=state_dim, action_dim=action_dim,
        b=b, steps=steps)

    assert len(outs) == steps + 1, len(outs)
    assert list(out_back) == []
    for y, y_ref in zip(outs, ref_outs):
        assert y.shape == (batch, 1, state_dim, 1), y.shape
        assert jnp.allclose(y, y_ref, atol=1e-5, rtol=1e-5), "mismatch vs reference"

    print("KERNEL_OK")
</pallas_src>

<mosaic_0001>
module attributes {stable_mosaic.version = 11 : i64} {
  func.func @_koopman_kernel(%arg0: i32, %arg1: memref<4x2xf32, #tpu.memory_space<vmem>>, %arg2: memref<3x2x2xf32, #tpu.memory_space<vmem>>, %arg3: memref<16x4xf32, #tpu.memory_space<vmem>>, %arg4: memref<16x1xf32, #tpu.memory_space<vmem>>, %arg5: memref<16x16xf32, #tpu.memory_space<vmem>>, %arg6: memref<16x1xf32, #tpu.memory_space<vmem>>, %arg7: memref<8x16xf32, #tpu.memory_space<vmem>>, %arg8: memref<8x1xf32, #tpu.memory_space<vmem>>, %arg9: memref<8x8xf32, #tpu.memory_space<vmem>>, %arg10: memref<8x2xf32, #tpu.memory_space<vmem>>, %arg11: memref<16x8xf32, #tpu.memory_space<vmem>>, %arg12: memref<16x1xf32, #tpu.memory_space<vmem>>, %arg13: memref<16x16xf32, #tpu.memory_space<vmem>>, %arg14: memref<16x1xf32, #tpu.memory_space<vmem>>, %arg15: memref<4x16xf32, #tpu.memory_space<vmem>>, %arg16: memref<4x1xf32, #tpu.memory_space<vmem>>, %arg17: memref<4x4x2xf32, #tpu.memory_space<vmem>>) attributes {dimension_semantics = [#tpu.dimension_semantics<parallel>], iteration_bounds = array<i64: 1>, scalar_prefetch = 0 : i64, scratch_operands = 0 : i64, tpu.core_type = #tpu.core_type<tc>, window_params = [{transform_indices = @transform_0, window_bounds = array<i64: 4, 2>}, {transform_indices = @transform_1, window_bounds = array<i64: 3, 2, 2>}, {pipeline_mode = #tpu.pipeline_mode<synchronous>, transform_indices = @transform_2, window_bounds = array<i64: 16, 4>}, {pipeline_mode = #tpu.pipeline_mode<synchronous>, transform_indices = @transform_3, window_bounds = array<i64: 16, 1>}, {pipeline_mode = #tpu.pipeline_mode<synchronous>, transform_indices = @transform_4, window_bounds = array<i64: 16, 16>}, {pipeline_mode = #tpu.pipeline_mode<synchronous>, transform_indices = @transform_5, window_bounds = array<i64: 16, 1>}, {pipeline_mode = #tpu.pipeline_mode<synchronous>, transform_indices = @transform_6, window_bounds = array<i64: 8, 16>}, {pipeline_mode = #tpu.pipeline_mode<synchronous>, transform_indices = @transform_7, window_bounds = array<i64: 8, 1>}, {pipeline_mode = #tpu.pipeline_mode<synchronous>, transform_indices = @transform_8, window_bounds = array<i64: 8, 8>}, {pipeline_mode = #tpu.pipeline_mode<synchronous>, transform_indices = @transform_9, window_bounds = array<i64: 8, 2>}, {pipeline_mode = #tpu.pipeline_mode<synchronous>, transform_indices = @transform_10, window_bounds = array<i64: 16, 8>}, {pipeline_mode = #tpu.pipeline_mode<synchronous>, transform_indices = @transform_11, window_bounds = array<i64: 16, 1>}, {pipeline_mode = #tpu.pipeline_mode<synchronous>, transform_indices = @transform_12, window_bounds = array<i64: 16, 16>}, {pipeline_mode = #tpu.pipeline_mode<synchronous>, transform_indices = @transform_13, window_bounds = array<i64: 16, 1>}, {pipeline_mode = #tpu.pipeline_mode<synchronous>, transform_indices = @transform_14, window_bounds = array<i64: 4, 16>}, {pipeline_mode = #tpu.pipeline_mode<synchronous>, transform_indices = @transform_15, window_bounds = array<i64: 4, 1>}, {transform_indices = @transform_16, window_bounds = array<i64: 4, 4, 2>}]} {
    %c0 = arith.constant 0 : index
    %c0_0 = arith.constant 0 : index
    %0 = vector.load %arg1[%c0, %c0_0] : memref<4x2xf32, #tpu.memory_space<vmem>>, vector<4x2xf32>
    %c0_1 = arith.constant 0 : index
    %c0_2 = arith.constant 0 : index
    %1 = vector.load %arg3[%c0_1, %c0_2] : memref<16x4xf32, #tpu.memory_space<vmem>>, vector<16x4xf32>
    %c0_3 = arith.constant 0 : index
    %c0_4 = arith.constant 0 : index
    %2 = vector.load %arg4[%c0_3, %c0_4] : memref<16x1xf32, #tpu.memory_space<vmem>>, vector<16x1xf32>
    %c0_5 = arith.constant 0 : index
    %c0_6 = arith.constant 0 : index
    %3 = vector.load %arg5[%c0_5, %c0_6] : memref<16x16xf32, #tpu.memory_space<vmem>>, vector<16x16xf32>
    %c0_7 = arith.constant 0 : index
    %c0_8 = arith.constant 0 : index
    %4 = vector.load %arg6[%c0_7, %c0_8] : memref<16x1xf32, #tpu.memory_space<vmem>>, vector<16x1xf32>
    %c0_9 = arith.constant 0 : index
    %c0_10 = arith.constant 0 : index
    %5 = vector.load %arg7[%c0_9, %c0_10] : memref<8x16xf32, #tpu.memory_space<vmem>>, vector<8x16xf32>
    %c0_11 = arith.constant 0 : index
    %c0_12 = arith.constant 0 : index
    %6 = vector.load %arg8[%c0_11, %c0_12] : memref<8x1xf32, #tpu.memory_space<vmem>>, vector<8x1xf32>
    %c0_13 = arith.constant 0 : index
    %c0_14 = arith.constant 0 : index
    %7 = vector.load %arg9[%c0_13, %c0_14] : memref<8x8xf32, #tpu.memory_space<vmem>>, vector<8x8xf32>
    %c0_15 = arith.constant 0 : index
    %c0_16 = arith.constant 0 : index
    %8 = vector.load %arg10[%c0_15, %c0_16] : memref<8x2xf32, #tpu.memory_space<vmem>>, vector<8x2xf32>
    %c0_17 = arith.constant 0 : index
    %c0_18 = arith.constant 0 : index
    %9 = vector.load %arg11[%c0_17, %c0_18] : memref<16x8xf32, #tpu.memory_space<vmem>>, vector<16x8xf32>
    %c0_19 = arith.constant 0 : index
    %c0_20 = arith.constant 0 : index
    %10 = vector.load %arg12[%c0_19, %c0_20] : memref<16x1xf32, #tpu.memory_space<vmem>>, vector<16x1xf32>
    %c0_21 = arith.constant 0 : index
    %c0_22 = arith.constant 0 : index
    %11 = vector.load %arg13[%c0_21, %c0_22] : memref<16x16xf32, #tpu.memory_space<vmem>>, vector<16x16xf32>
    %c0_23 = arith.constant 0 : index
    %c0_24 = arith.constant 0 : index
    %12 = vector.load %arg14[%c0_23, %c0_24] : memref<16x1xf32, #tpu.memory_space<vmem>>, vector<16x1xf32>
    %c0_25 = arith.constant 0 : index
    %c0_26 = arith.constant 0 : index
    %13 = vector.load %arg15[%c0_25, %c0_26] : memref<4x16xf32, #tpu.memory_space<vmem>>, vector<4x16xf32>
    %c0_27 = arith.constant 0 : index
    %c0_28 = arith.constant 0 : index
    %14 = vector.load %arg16[%c0_27, %c0_28] : memref<4x1xf32, #tpu.memory_space<vmem>>, vector<4x1xf32>
    %cst = arith.constant dense<0.000000e+00> : vector<16x2xf32>
    %15 = tpu.matmul %1, %0, %cst {dimension_numbers = #tpu.dot_dimension_numbers<[1], [0], [0], [1], [0, 0, 1, 1], [], []>} : vector<16x4xf32>, vector<4x2xf32>, vector<16x2xf32> -> vector<16x2xf32>
    %16 = vector.broadcast %2 : vector<16x1xf32> to vector<16x2xf32>
    %17 = arith.addf %15, %16 : vector<16x2xf32>
    %18 = math.tanh %17 : vector<16x2xf32>
    %cst_29 = arith.constant dense<0.000000e+00> : vector<16x2xf32>
    %19 = tpu.matmul %3, %18, %cst_29 {dimension_numbers = #tpu.dot_dimension_numbers<[1], [0], [0], [1], [0, 0, 1, 1], [], []>} : vector<16x16xf32>, vector<16x2xf32>, vector<16x2xf32> -> vector<16x2xf32>
    %20 = vector.broadcast %4 : vector<16x1xf32> to vector<16x2xf32>
    %21 = arith.addf %19, %20 : vector<16x2xf32>
    %22 = math.tanh %21 : vector<16x2xf32>
    %cst_30 = arith.constant dense<0.000000e+00> : vector<8x2xf32>
    %23 = tpu.matmul %5, %22, %cst_30 {dimension_numbers = #tpu.dot_dimension_numbers<[1], [0], [0], [1], [0, 0, 1, 1], [], []>} : vector<8x16xf32>, vector<16x2xf32>, vector<8x2xf32> -> vector<8x2xf32>
    %24 = vector.broadcast %6 : vector<8x1xf32> to vector<8x2xf32>
    %25 = arith.addf %23, %24 : vector<8x2xf32>
    %c0_31 = arith.constant 0 : index
    %c0_32 = arith.constant 0 : index
    %c0_33 = arith.constant 0 : index
    %26 = vector.load %arg2[%c0_31, %c0_32, %c0_33] : memref<3x2x2xf32, #tpu.memory_space<vmem>>, vector<1x2x2xf32>
    %27 = vector.shape_cast %26 : vector<1x2x2xf32> to vector<2x2xf32>
    %cst_34 = arith.constant dense<0.000000e+00> : vector<8x2xf32>
    %28 = tpu.matmul %7, %25, %cst_34 {dimension_numbers = #tpu.dot_dimension_numbers<[1], [0], [0], [1], [0, 0, 1, 1], [], []>} : vector<8x8xf32>, vector<8x2xf32>, vector<8x2xf32> -> vector<8x2xf32>
    %cst_35 = arith.constant dense<0.000000e+00> : vector<8x2xf32>
    %29 = tpu.matmul %8, %27, %cst_35 {dimension_numbers = #tpu.dot_dimension_numbers<[1], [0], [0], [1], [0, 0, 1, 1], [], []>} : vector<8x2xf32>, vector<2x2xf32>, vector<8x2xf32> -> vector<8x2xf32>
    %30 = arith.addf %28, %29 : vector<8x2xf32>
    %cst_36 = arith.constant dense<0.000000e+00> : vector<16x2xf32>
    %31 = tpu.matmul %9, %30, %cst_36 {dimension_numbers = #tpu.dot_dimension_numbers<[1], [0], [0], [1], [0, 0, 1, 1], [], []>} : vector<16x8xf32>, vector<8x2xf32>, vector<16x2xf32> -> vector<16x2xf32>
    %32 = vector.broadcast %10 : vector<16x1xf32> to vector<16x2xf32>
    %33 = arith.addf %31, %32 : vector<16x2xf32>
    %34 = math.tanh %33 : vector<16x2xf32>
    %cst_37 = arith.constant dense<0.000000e+00> : vector<16x2xf32>
    %35 = tpu.matmul %11, %34, %cst_37 {dimension_numbers = #tpu.dot_dimension_numbers<[1], [0], [0], [1], [0, 0, 1, 1], [], []>} : vector<16x16xf32>, vector<16x2xf32>, vector<16x2xf32> -> vector<16x2xf32>
    %36 = vector.broadcast %12 : vector<16x1xf32> to vector<16x2xf32>
    %37 = arith.addf %35, %36 : vector<16x2xf32>
    %38 = math.tanh %37 : vector<16x2xf32>
    %cst_38 = arith.constant dense<0.000000e+00> : vector<4x2xf32>
    %39 = tpu.matmul %13, %38, %cst_38 {dimension_numbers = #tpu.dot_dimension_numbers<[1], [0], [0], [1], [0, 0, 1, 1], [], []>} : vector<4x16xf32>, vector<16x2xf32>, vector<4x2xf32> -> vector<4x2xf32>
    %40 = vector.broadcast %14 : vector<4x1xf32> to vector<4x2xf32>
    %41 = arith.addf %39, %40 : vector<4x2xf32>
    %42 = math.tanh %41 : vector<4x2xf32>
    %c0_39 = arith.constant 0 : index
    %c0_40 = arith.constant 0 : index
    %c0_41 = arith.constant 0 : index
    %43 = vector.load %arg17[%c0_39, %c0_40, %c0_41] : memref<4x4x2xf32, #tpu.memory_space<vmem>>, vector<1x4x2xf32>
    %44 = vector.shape_cast %43 : vector<1x4x2xf32> to vector<4x2xf32>
    %45 = vector.shape_cast %42 : vector<4x2xf32> to vector<1x4x2xf32>
    tpu.vector_store %arg17[%c0_39, %c0_40, %c0_41], %45 {strides = array<i32>} : memref<4x4x2xf32, #tpu.memory_space<vmem>>, vector<1x4x2xf32>,
    %c1 = arith.constant 1 : index
    %c0_42 = arith.constant 0 : index
    %c0_43 = arith.constant 0 : index
    %46 = vector.load %arg2[%c1, %c0_42, %c0_43] : memref<3x2x2xf32, #tpu.memory_space<vmem>>, vector<1x2x2xf32>
    %47 = vector.shape_cast %46 : vector<1x2x2xf32> to vector<2x2xf32>
    %cst_44 = arith.constant dense<0.000000e+00> : vector<8x2xf32>
    %48 = tpu.matmul %7, %30, %cst_44 {dimension_numbers = #tpu.dot_dimension_numbers<[1], [0], [0], [1], [0, 0, 1, 1], [], []>} : vector<8x8xf32>, vector<8x2xf32>, vector<8x2xf32> -> vector<8x2xf32>
    %cst_45 = arith.constant dense<0.000000e+00> : vector<8x2xf32>
    %49 = tpu.matmul %8, %47, %cst_45 {dimension_numbers = #tpu.dot_dimension_numbers<[1], [0], [0], [1], [0, 0, 1, 1], [], []>} : vector<8x2xf32>, vector<2x2xf32>, vector<8x2xf32> -> vector<8x2xf32>
    %50 = arith.addf %48, %49 : vector<8x2xf32>
    %cst_46 = arith.constant dense<0.000000e+00> : vector<16x2xf32>
    %51 = tpu.matmul %9, %50, %cst_46 {dimension_numbers = #tpu.dot_dimension_numbers<[1], [0], [0], [1], [0, 0, 1, 1], [], []>} : vector<16x8xf32>, vector<8x2xf32>, vector<16x2xf32> -> vector<16x2xf32>
    %52 = vector.broadcast %10 : vector<16x1xf32> to vector<16x2xf32>
    %53 = arith.addf %51, %52 : vector<16x2xf32>
    %54 = math.tanh %53 : vector<16x2xf32>
    %cst_47 = arith.constant dense<0.000000e+00> : vector<16x2xf32>
    %55 = tpu.matmul %11, %54, %cst_47 {dimension_numbers = #tpu.dot_dimension_numbers<[1], [0], [0], [1], [0, 0, 1, 1], [], []>} : vector<16x16xf32>, vector<16x2xf32>, vector<16x2xf32> -> vector<16x2xf32>
    %56 = vector.broadcast %12 : vector<16x1xf32> to vector<16x2xf32>
    %57 = arith.addf %55, %56 : vector<16x2xf32>
    %58 = math.tanh %57 : vector<16x2xf32>
    %cst_48 = arith.constant dense<0.000000e+00> : vector<4x2xf32>
    %59 = tpu.matmul %13, %58, %cst_48 {dimension_numbers = #tpu.dot_dimension_numbers<[1], [0], [0], [1], [0, 0, 1, 1], [], []>} : vector<4x16xf32>, vector<16x2xf32>, vector<4x2xf32> -> vector<4x2xf32>
    %60 = vector.broadcast %14 : vector<4x1xf32> to vector<4x2xf32>
    %61 = arith.addf %59, %60 : vector<4x2xf32>
    %62 = math.tanh %61 : vector<4x2xf32>
    %c1_49 = arith.constant 1 : index
    %c0_50 = arith.constant 0 : index
    %c0_51 = arith.constant 0 : index
    %63 = vector.load %arg17[%c1_49, %c0_50, %c0_51] : memref<4x4x2xf32, #tpu.memory_space<vmem>>, vector<1x4x2xf32>
    %64 = vector.shape_cast %63 : vector<1x4x2xf32> to vector<4x2xf32>
    %65 = vector.shape_cast %62 : vector<4x2xf32> to vector<1x4x2xf32>
    tpu.vector_store %arg17[%c1_49, %c0_50, %c0_51], %65 {strides = array<i32>} : memref<4x4x2xf32, #tpu.memory_space<vmem>>, vector<1x4x2xf32>,
    %c2 = arith.constant 2 : index
    %c0_52 = arith.constant 0 : index
    %c0_53 = arith.constant 0 : index
    %66 = vector.load %arg2[%c2, %c0_52, %c0_53] : memref<3x2x2xf32, #tpu.memory_space<vmem>>, vector<1x2x2xf32>
    %67 = vector.shape_cast %66 : vector<1x2x2xf32> to vector<2x2xf32>
    %cst_54 = arith.constant dense<0.000000e+00> : vector<8x2xf32>
    %68 = tpu.matmul %7, %50, %cst_54 {dimension_numbers = #tpu.dot_dimension_numbers<[1], [0], [0], [1], [0, 0, 1, 1], [], []>} : vector<8x8xf32>, vector<8x2xf32>, vector<8x2xf32> -> vector<8x2xf32>
    %cst_55 = arith.constant dense<0.000000e+00> : vector<8x2xf32>
    %69 = tpu.matmul %8, %67, %cst_55 {dimension_numbers = #tpu.dot_dimension_numbers<[1], [0], [0], [1], [0, 0, 1, 1], [], []>} : vector<8x2xf32>, vector<2x2xf32>, vector<8x2xf32> -> vector<8x2xf32>
    %70 = arith.addf %68, %69 : vector<8x2xf32>
    %cst_56 = arith.constant dense<0.000000e+00> : vector<16x2xf32>
    %71 = tpu.matmul %9, %70, %cst_56 {dimension_numbers = #tpu.dot_dimension_numbers<[1], [0], [0], [1], [0, 0, 1, 1], [], []>} : vector<16x8xf32>, vector<8x2xf32>, vector<16x2xf32> -> vector<16x2xf32>
    %72 = vector.broadcast %10 : vector<16x1xf32> to vector<16x2xf32>
    %73 = arith.addf %71, %72 : vector<16x2xf32>
    %74 = math.tanh %73 : vector<16x2xf32>
    %cst_57 = arith.constant dense<0.000000e+00> : vector<16x2xf32>
    %75 = tpu.matmul %11, %74, %cst_57 {dimension_numbers = #tpu.dot_dimension_numbers<[1], [0], [0], [1], [0, 0, 1, 1], [], []>} : vector<16x16xf32>, vector<16x2xf32>, vector<16x2xf32> -> vector<16x2xf32>
    %76 = vector.broadcast %12 : vector<16x1xf32> to vector<16x2xf32>
    %77 = arith.addf %75, %76 : vector<16x2xf32>
    %78 = math.tanh %77 : vector<16x2xf32>
    %cst_58 = arith.constant dense<0.000000e+00> : vector<4x2xf32>
    %79 = tpu.matmul %13, %78, %cst_58 {dimension_numbers = #tpu.dot_dimension_numbers<[1], [0], [0], [1], [0, 0, 1, 1], [], []>} : vector<4x16xf32>, vector<16x2xf32>, vector<4x2xf32> -> vector<4x2xf32>
    %80 = vector.broadcast %14 : vector<4x1xf32> to vector<4x2xf32>
    %81 = arith.addf %79, %80 : vector<4x2xf32>
    %82 = math.tanh %81 : vector<4x2xf32>
    %c2_59 = arith.constant 2 : index
    %c0_60 = arith.constant 0 : index
    %c0_61 = arith.constant 0 : index
    %83 = vector.load %arg17[%c2_59, %c0_60, %c0_61] : memref<4x4x2xf32, #tpu.memory_space<vmem>>, vector<1x4x2xf32>
    %84 = vector.shape_cast %83 : vector<1x4x2xf32> to vector<4x2xf32>
    %85 = vector.shape_cast %82 : vector<4x2xf32> to vector<1x4x2xf32>
    tpu.vector_store %arg17[%c2_59, %c0_60, %c0_61], %85 {strides = array<i32>} : memref<4x4x2xf32, #tpu.memory_space<vmem>>, vector<1x4x2xf32>,
    %cst_62 = arith.constant dense<0.000000e+00> : vector<16x2xf32>
    %86 = tpu.matmul %9, %25, %cst_62 {dimension_numbers = #tpu.dot_dimension_numbers<[1], [0], [0], [1], [0, 0, 1, 1], [], []>} : vector<16x8xf32>, vector<8x2xf32>, vector<16x2xf32> -> vector<16x2xf32>
    %87 = vector.broadcast %10 : vector<16x1xf32> to vector<16x2xf32>
    %88 = arith.addf %86, %87 : vector<16x2xf32>
    %89 = math.tanh %88 : vector<16x2xf32>
    %cst_63 = arith.constant dense<0.000000e+00> : vector<16x2xf32>
    %90 = tpu.matmul %11, %89, %cst_63 {dimension_numbers = #tpu.dot_dimension_numbers<[1], [0], [0], [1], [0, 0, 1, 1], [], []>} : vector<16x16xf32>, vector<16x2xf32>, vector<16x2xf32> -> vector<16x2xf32>
    %91 = vector.broadcast %12 : vector<16x1xf32> to vector<16x2xf32>
    %92 = arith.addf %90, %91 : vector<16x2xf32>
    %93 = math.tanh %92 : vector<16x2xf32>
    %cst_64 = arith.constant dense<0.000000e+00> : vector<4x2xf32>
    %94 = tpu.matmul %13, %93, %cst_64 {dimension_numbers = #tpu.dot_dimension_numbers<[1], [0], [0], [1], [0, 0, 1, 1], [], []>} : vector<4x16xf32>, vector<16x2xf32>, vector<4x2xf32> -> vector<4x2xf32>
    %95 = vector.broadcast %14 : vector<4x1xf32> to vector<4x2xf32>
    %96 = arith.addf %94, %95 : vector<4x2xf32>
    %97 = math.tanh %96 : vector<4x2xf32>
    %c3 = arith.constant 3 : index
    %c0_65 = arith.constant 0 : index
    %c0_66 = arith.constant 0 : index
    %98 = vector.load %arg17[%c3, %c0_65, %c0_66] : memref<4x4x2xf32, #tpu.memory_space<vmem>>, vector<1x4x2xf32>
    %99 = vector.shape_cast %98 : vector<1x4x2xf32> to vector<4x2xf32>
    %100 = vector.shape_cast %97 : vector<4x2xf32> to vector<1x4x2xf32>
    tpu.vector_store %arg17[%c3, %c0_65, %c0_66], %100 {strides = array<i32>} : memref<4x4x2xf32, #tpu.memory_space<vmem>>, vector<1x4x2xf32>,
    return
  }
  func.func @transform_0(%arg0: i32) -> (i32, i32) {
    %c0_i32 = arith.constant 0 : i32
    %c0_i32_0 = arith.constant 0 : i32
    return %c0_i32, %arg0 : i32, i32
  }
  func.func @transform_1(%arg0: i32) -> (i32, i32, i32) {
    %c0_i32 = arith.constant 0 : i32
    %c0_i32_0 = arith.constant 0 : i32
    %c0_i32_1 = arith.constant 0 : i32
    return %c0_i32, %c0_i32_0, %arg0 : i32, i32, i32
  }
  func.func @transform_2(%arg0: i32) -> (i32, i32) {
    %c0_i32 = arith.constant 0 : i32
    %c0_i32_0 = arith.constant 0 : i32
    %c0_i32_1 = arith.constant 0 : i32
    return %c0_i32, %c0_i32_0 : i32, i32
  }
  func.func @transform_3(%arg0: i32) -> (i32, i32) {
    %c0_i32 = arith.constant 0 : i32
    %c0_i32_0 = arith.constant 0 : i32
    %c0_i32_1 = arith.constant 0 : i32
    return %c0_i32, %c0_i32_0 : i32, i32
  }
  func.func @transform_4(%arg0: i32) -> (i32, i32) {
    %c0_i32 = arith.constant 0 : i32
    %c0_i32_0 = arith.constant 0 : i32
    %c0_i32_1 = arith.constant 0 : i32
    return %c0_i32, %c0_i32_0 : i32, i32
  }
  func.func @transform_5(%arg0: i32) -> (i32, i32) {
    %c0_i32 = arith.constant 0 : i32
    %c0_i32_0 = arith.constant 0 : i32
    %c0_i32_1 = arith.constant 0 : i32
    return %c0_i32, %c0_i32_0 : i32, i32
  }
  func.func @transform_6(%arg0: i32) -> (i32, i32) {
    %c0_i32 = arith.constant 0 : i32
    %c0_i32_0 = arith.constant 0 : i32
    %c0_i32_1 = arith.constant 0 : i32
    return %c0_i32, %c0_i32_0 : i32, i32
  }
  func.func @transform_7(%arg0: i32) -> (i32, i32) {
    %c0_i32 = arith.constant 0 : i32
    %c0_i32_0 = arith.constant 0 : i32
    %c0_i32_1 = arith.constant 0 : i32
    return %c0_i32, %c0_i32_0 : i32, i32
  }
  func.func @transform_8(%arg0: i32) -> (i32, i32) {
    %c0_i32 = arith.constant 0 : i32
    %c0_i32_0 = arith.constant 0 : i32
    %c0_i32_1 = arith.constant 0 : i32
    return %c0_i32, %c0_i32_0 : i32, i32
  }
  func.func @transform_9(%arg0: i32) -> (i32, i32) {
    %c0_i32 = arith.constant 0 : i32
    %c0_i32_0 = arith.constant 0 : i32
    %c0_i32_1 = arith.constant 0 : i32
    return %c0_i32, %c0_i32_0 : i32, i32
  }
  func.func @transform_10(%arg0: i32) -> (i32, i32) {
    %c0_i32 = arith.constant 0 : i32
    %c0_i32_0 = arith.constant 0 : i32
    %c0_i32_1 = arith.constant 0 : i32
    return %c0_i32, %c0_i32_0 : i32, i32
  }
  func.func @transform_11(%arg0: i32) -> (i32, i32) {
    %c0_i32 = arith.constant 0 : i32
    %c0_i32_0 = arith.constant 0 : i32
    %c0_i32_1 = arith.constant 0 : i32
    return %c0_i32, %c0_i32_0 : i32, i32
  }
  func.func @transform_12(%arg0: i32) -> (i32, i32) {
    %c0_i32 = arith.constant 0 : i32
    %c0_i32_0 = arith.constant 0 : i32
    %c0_i32_1 = arith.constant 0 : i32
    return %c0_i32, %c0_i32_0 : i32, i32
  }
  func.func @transform_13(%arg0: i32) -> (i32, i32) {
    %c0_i32 = arith.constant 0 : i32
    %c0_i32_0 = arith.constant 0 : i32
    %c0_i32_1 = arith.constant 0 : i32
    return %c0_i32, %c0_i32_0 : i32, i32
  }
  func.func @transform_14(%arg0: i32) -> (i32, i32) {
    %c0_i32 = arith.constant 0 : i32
    %c0_i32_0 = arith.constant 0 : i32
    %c0_i32_1 = arith.constant 0 : i32
    return %c0_i32, %c0_i32_0 : i32, i32
  }
  func.func @transform_15(%arg0: i32) -> (i32, i32) {
    %c0_i32 = arith.constant 0 : i32
    %c0_i32_0 = arith.constant 0 : i32
    %c0_i32_1 = arith.constant 0 : i32
    return %c0_i32, %c0_i32_0 : i32, i32
  }
  func.func @transform_16(%arg0: i32) -> (i32, i32, i32) {
    %c0_i32 = arith.constant 0 : i32
    %c0_i32_0 = arith.constant 0 : i32
    %c0_i32_1 = arith.constant 0 : i32
    return %c0_i32, %c0_i32_0, %arg0 : i32, i32, i32
  }
}

</mosaic_0001>

<llo_original>
// kernel: koopman_ae_forward.1
$region0: #{koopman_ae_forward.1}
  #allocation0 [shape = 'u32[]', space=smem, size = 0x4, offset = 0x4, fixed_abs, tag = 'smem constant byte address 0x4 - core index']
  #allocation1 [shape = 'u32[144,128]{1,0:T(1,128)}', space=vmem, size = 0x12000, scoped, tag = 'internal scratch']
  %s0 = inlined_call_operand.vmem [shape: f32[4,2], index: 0, kind: input, shape index: {}]
  %s1 = inlined_call_operand.vmem [shape: f32[3,2,2], index: 1, kind: input, shape index: {}]
  %s2 = inlined_call_operand.vmem [shape: f32[16,4], index: 2, kind: input, shape index: {}]
  %s3 = inlined_call_operand.vmem [shape: f32[16,1], index: 3, kind: input, shape index: {}]
  %s4 = inlined_call_operand.vmem [shape: f32[16,16], index: 4, kind: input, shape index: {}]
  %s5 = inlined_call_operand.vmem [shape: f32[16,1], index: 5, kind: input, shape index: {}]
  %s6 = inlined_call_operand.vmem [shape: f32[8,16], index: 6, kind: input, shape index: {}]
  %s7 = inlined_call_operand.vmem [shape: f32[8,1], index: 7, kind: input, shape index: {}]
  %s8 = inlined_call_operand.vmem [shape: f32[8,8], index: 8, kind: input, shape index: {}]
  %s9 = inlined_call_operand.vmem [shape: f32[8,2], index: 9, kind: input, shape index: {}]
  %s10 = inlined_call_operand.vmem [shape: f32[16,8], index: 10, kind: input, shape index: {}]
  %s11 = inlined_call_operand.vmem [shape: f32[16,1], index: 11, kind: input, shape index: {}]
  %s12 = inlined_call_operand.vmem [shape: f32[16,16], index: 12, kind: input, shape index: {}]
  %s13 = inlined_call_operand.vmem [shape: f32[16,1], index: 13, kind: input, shape index: {}]
  %s14 = inlined_call_operand.vmem [shape: f32[4,16], index: 14, kind: input, shape index: {}]
  %s15 = inlined_call_operand.vmem [shape: f32[4,1], index: 15, kind: input, shape index: {}]
  %s16 = inlined_call_operand.vmem [shape: f32[4,4,2], index: 16, kind: output, shape index: {}]
  %s17 = sld [smem:[#allocation0]]
  $region74: #{koopman_ae_forward.1} parent=0
    _
  %s19 = ssub.s32 1, %s17
  %s20 = scalar_select 0, %s19, %s17
  // Predicated region
  $region2: #{koopman_ae_forward.1} parent=0 // pred_check
    _
  $region3: #{koopman_ae_forward.1} parent=0 // pred_check_branch
    %22 = sbr.rel (0) target = $region5
  $region4: #{koopman_ae_forward.1} parent=0 // pred_region
    _
  $region5: #{koopman_ae_forward.1} parent=0 // pred_fallthru
    _
  // Predicated region
  $region6: #{koopman_ae_forward.1} parent=0 // pred_check
    _
  $region7: #{koopman_ae_forward.1} parent=0 // pred_check_branch
    %24 = sbr.rel (0) target = $region9
  $region8: #{koopman_ae_forward.1} parent=0 // pred_region
    _
  $region9: #{koopman_ae_forward.1} parent=0 // pred_fallthru
    _
  // Predicated region
  $region10: #{koopman_ae_forward.1} parent=0 // pred_check
    _
  $region11: #{koopman_ae_forward.1} parent=0 // pred_check_branch
    %26 = sbr.rel (0) target = $region13
  $region12: #{koopman_ae_forward.1} parent=0 // pred_region
    _
  $region13: #{koopman_ae_forward.1} parent=0 // pred_fallthru
    _
  // Predicated region
  $region14: #{koopman_ae_forward.1} parent=0 // pred_check
    _
  $region15: #{koopman_ae_forward.1} parent=0 // pred_check_branch
    %28 = sbr.rel (0) target = $region17
  $region16: #{koopman_ae_forward.1} parent=0 // pred_region
    _
  $region17: #{koopman_ae_forward.1} parent=0 // pred_fallthru
    _
  // Predicated region
  $region18: #{koopman_ae_forward.1} parent=0 // pred_check
    _
  $region19: #{koopman_ae_forward.1} parent=0 // pred_check_branch
    %30 = sbr.rel (0) target = $region21
  $region20: #{koopman_ae_forward.1} parent=0 // pred_region
    _
  $region21: #{koopman_ae_forward.1} parent=0 // pred_fallthru
    _
  // Predicated region
  $region22: #{koopman_ae_forward.1} parent=0 // pred_check
    _
  $region23: #{koopman_ae_forward.1} parent=0 // pred_check_branch
    %32 = sbr.rel (0) target = $region25
  $region24: #{koopman_ae_forward.1} parent=0 // pred_region
    _
  $region25: #{koopman_ae_forward.1} parent=0 // pred_fallthru
    _
  // Predicated region
  $region26: #{koopman_ae_forward.1} parent=0 // pred_check
    _
  $region27: #{koopman_ae_forward.1} parent=0 // pred_check_branch
    %34 = sbr.rel (0) target = $region29
  $region28: #{koopman_ae_forward.1} parent=0 // pred_region
    _
  $region29: #{koopman_ae_forward.1} parent=0 // pred_fallthru
    _
  // Predicated region
  $region30: #{koopman_ae_forward.1} parent=0 // pred_check
    _
  $region31: #{koopman_ae_forward.1} parent=0 // pred_check_branch
    %36 = sbr.rel (0) target = $region33
  $region32: #{koopman_ae_forward.1} parent=0 // pred_region
    _
  $region33: #{koopman_ae_forward.1} parent=0 // pred_fallthru
    _
  // Predicated region
  $region34: #{koopman_ae_forward.1} parent=0 // pred_check
    _
  $region35: #{koopman_ae_forward.1} parent=0 // pred_check_branch
    %38 = sbr.rel (0) target = $region37
  $region36: #{koopman_ae_forward.1} parent=0 // pred_region
    _
  $region37: #{koopman_ae_forward.1} parent=0 // pred_fallthru
    _
  // Predicated region
  $region38: #{koopman_ae_forward.1} parent=0 // pred_check
    _
  $region39: #{koopman_ae_forward.1} parent=0 // pred_check_branch
    %40 = sbr.rel (0) target = $region41
  $region40: #{koopman_ae_forward.1} parent=0 // pred_region
    _
  $region41: #{koopman_ae_forward.1} parent=0 // pred_fallthru
    _
  // Predicated region
  $region42: #{koopman_ae_forward.1} parent=0 // pred_check
    _
  $region43: #{koopman_ae_forward.1} parent=0 // pred_check_branch
    %42 = sbr.rel (0) target = $region45
  $region44: #{koopman_ae_forward.1} parent=0 // pred_region
    _
  $region45: #{koopman_ae_forward.1} parent=0 // pred_fallthru
    _
  // Predicated region
  $region46: #{koopman_ae_forward.1} parent=0 // pred_check
    _
  $region47: #{koopman_ae_forward.1} parent=0 // pred_check_branch
    %44 = sbr.rel (0) target = $region49
  $region48: #{koopman_ae_forward.1} parent=0 // pred_region
    _
  $region49: #{koopman_ae_forward.1} parent=0 // pred_fallthru
    _
  // Predicated region
  $region50: #{koopman_ae_forward.1} parent=0 // pred_check
    _
  $region51: #{koopman_ae_forward.1} parent=0 // pred_check_branch
    %46 = sbr.rel (0) target = $region53
  $region52: #{koopman_ae_forward.1} parent=0 // pred_region
    _
  $region53: #{koopman_ae_forward.1} parent=0 // pred_fallthru
    _
  // Predicated region
  $region54: #{koopman_ae_forward.1} parent=0 // pred_check
    _
  $region55: #{koopman_ae_forward.1} parent=0 // pred_check_branch
    %48 = sbr.rel (0) target = $region57
  $region56: #{koopman_ae_forward.1} parent=0 // pred_region
    _
  $region57: #{koopman_ae_forward.1} parent=0 // pred_fallthru
    _
  // Predicated region
  $region58: #{koopman_ae_forward.1} parent=0 // pred_check
    _
  $region59: #{koopman_ae_forward.1} parent=0 // pred_check_branch
    %50 = sbr.rel (0) target = $region61
  $region60: #{koopman_ae_forward.1} parent=0 // pred_region
    _
  $region61: #{koopman_ae_forward.1} parent=0 // pred_fallthru
    _
  // Predicated region
  $region62: #{koopman_ae_forward.1} parent=0 // pred_check
    _
  $region63: #{koopman_ae_forward.1} parent=0 // pred_check_branch
    %52 = sbr.rel (0) target = $region65
  $region64: #{koopman_ae_forward.1} parent=0 // pred_region
    _
  $region65: #{koopman_ae_forward.1} parent=0 // pred_fallthru
    _
  %v53 = vld [vmem:[%s0] sm:$0xf]
  %v54 = vld [vmem:[%s2] sm:$0xff]
  %v55 = vld [vmem:[%s2 + $0x8] sm:$0xff]
  %v56 = vld [vmem:[%s3] sm:$0xff]
  %v57 = vld [vmem:[%s3 + $0x8] sm:$0xff]
  %v58 = vld [vmem:[%s4] sm:$0xff]
  %v59 = vld [vmem:[%s4 + $0x8] sm:$0xff]
  %v60 = vld [vmem:[%s5] sm:$0xff]
  %v61 = vld [vmem:[%s5 + $0x8] sm:$0xff]
  %v62 = vld [vmem:[%s6] sm:$0xff]
  %v63 = vld [vmem:[%s7] sm:$0xff]
  %v64 = vld [vmem:[%s8] sm:$0xff]
  %v65 = vld [vmem:[%s9] sm:$0xff]
  %v66 = vld [vmem:[%s10] sm:$0xff]
  %v67 = vld [vmem:[%s10 + $0x8] sm:$0xff]
  %v68 = vld [vmem:[%s11] sm:$0xff]
  %v69 = vld [vmem:[%s11 + $0x8] sm:$0xff]
  %v70 = vld [vmem:[%s12] sm:$0xff]
  %v71 = vld [vmem:[%s12 + $0x8] sm:$0xff]
  %v72 = vld [vmem:[%s13] sm:$0xff]
  %v73 = vld [vmem:[%s13 + $0x8] sm:$0xff]
  %v74 = vld [vmem:[%s14] sm:$0xf]
  %v75 = vld [vmem:[%s15] sm:$0xf]
  %77 = vset.pattern.permute.xlu0 0
  %78 = vperm.xlu0 %77, %v56
  %v79 = vpop.permute.xlu0 %78
  %82 = vset.pattern.permute.xlu0 0
  %83 = vperm.xlu0 %82, %v57
  %v84 = vpop.permute.xlu0 %83
  %vm86 = vcmask 31744
  %v88 = vsel %vm86, %v54, 0
  %v91 = vsel %vm86, %v55, 0
  %vm93 = vcmask 1043456
  %v95 = vsel %vm93, %v53, 0
  %97 = vmatprep.subr.mxu0 0.0
  %98 = vmatpush1.msra.mxu0 0.0
  %99 = vmatprep.subr.mxu0 0.0
  %100 = vmatpush1.msra.mxu0 0.0
  %101 = vmatprep.subr.mxu0 0.0
  %102 = vmatpush1.msra.mxu0 0.0
  %103 = vmatprep.subr.mxu0 0.0
  %104 = vmatpush1.msra.mxu0 0.0
  %105 = vmatprep.subr.mxu0 0.0
  %106 = vmatpush1.msra.mxu0 0.0
  %107 = vmatprep.subr.mxu0 0.0
  %108 = vmatpush1.msra.mxu0 0.0
  %109 = vmatprep.subr.mxu0 0.0
  %110 = vmatpush1.msra.mxu0 0.0
  %111 = vmatprep.subr.mxu0 0.0
  %112 = vmatpush1.msra.mxu0 0.0
  %113 = vmatprep.subr.mxu0 0.0
  %114 = vmatpush1.msra.mxu0 0.0
  %115 = vmatprep.subr.mxu0 0.0
  %116 = vmatpush1.msra.mxu0 0.0
  %117 = vmatprep.subr.mxu0 0.0
  %118 = vmatpush1.msra.mxu0 0.0
  %119 = vmatprep.subr.mxu0 0.0
  %120 = vmatpush1.msra.mxu0 0.0
  %121 = vmatprep.subr.mxu0 0.0
  %122 = vmatpush1.msra.mxu0 0.0
  %123 = vmatprep.subr.mxu0 0.0
  %124 = vmatpush1.msra.mxu0 0.0
  %125 = vmatprep.subr.mxu0 0.0
  %126 = vmatpush1.msra.mxu0 0.0
  %127 = vmatprep.subr.mxu0 0.0
  %128 = vmatpush1.msra.mxu0 %v95
  %129 = vmatprep.subr.mxu0 0.0
  %130 = vmatpush2.msra.mxu0 0.0
  %131 = vmatprep.subr.mxu0 0.0
  %132 = vmatpush2.msra.mxu0 0.0
  %133 = vmatprep.subr.mxu0 0.0
  %134 = vmatpush2.msra.mxu0 0.0
  %135 = vmatprep.subr.mxu0 0.0
  %136 = vmatpush2.msra.mxu0 0.0
  %137 = vmatprep.subr.mxu0 0.0
  %138 = vmatpush2.msra.mxu0 0.0
  %139 = vmatprep.subr.mxu0 0.0
  %140 = vmatpush2.msra.mxu0 0.0
  %141 = vmatprep.subr.mxu0 0.0
  %142 = vmatpush2.msra.mxu0 0.0
  %143 = vmatprep.subr.mxu0 0.0
  %144 = vmatpush2.msra.mxu0 0.0
  %145 = vmatprep.subr.mxu0 0.0
  %146 = vmatpush2.msra.mxu0 0.0
  %147 = vmatprep.subr.mxu0 0.0
  %148 = vmatpush2.msra.mxu0 0.0
  %149 = vmatprep.subr.mxu0 0.0
  %150 = vmatpush2.msra.mxu0 0.0
  %151 = vmatprep.subr.mxu0 0.0
  %152 = vmatpush2.msra.mxu0 0.0
  %153 = vmatprep.subr.mxu0 0.0
  %154 = vmatpush2.msra.mxu0 0.0
  %155 = vmatprep.subr.mxu0 0.0
  %156 = vmatpush2.msra.mxu0 0.0
  %157 = vmatprep.subr.mxu0 0.0
  %158 = vmatpush2.msra.mxu0 0.0
  %159 = vmatprep.subr.mxu0 0.0
  %160 = vmatpush2.msra.mxu0 0.0
  %161 = vmatprep.mubr.f32.mxu0 0.0
  %162 = vmatmul.mubr.f32.gmra.mxu0 %v88
  %v163 = vpop.f32.mrf.mxu0
  %v164 = vadd.f32 %v79, %v163
  %v165 = vpop.f32.mrf.mxu0
  %166 = vmatprep.mubr.f32.mxu0 0.0
  %167 = vmatmul.mubr.f32.gmra.mxu0 %v91
  %v168 = vpop.f32.mrf.mxu0
  %v169 = vadd.f32 %v84, %v168
  %v170 = vpop.f32.mrf.mxu0
  %171 = vdwg.mxu0
  %v172 = vtanh.pop %v164
  %v173 = vtanh.pop %v169
  %175 = vset.pattern.permute.xlu0 0
  %176 = vperm.xlu0 %175, %v60
  %v177 = vpop.permute.xlu0 %176
  %180 = vset.pattern.permute.xlu0 0
  %181 = vperm.xlu0 %180, %v61
  %v182 = vpop.permute.xlu0 %181
  %vm184 = vcmask 130048
  %v186 = vsel %vm184, %v58, 0
  %v189 = vsel %vm184, %v59, 0
  %191 = vmatprep.subr.mxu0 0.0
  %192 = vmatpush1.msra.mxu0 0.0
  %193 = vmatprep.subr.mxu0 0.0
  %194 = vmatpush1.msra.mxu0 0.0
  %195 = vmatprep.subr.mxu0 0.0
  %196 = vmatpush1.msra.mxu0 0.0
  %197 = vmatprep.subr.mxu0 0.0
  %198 = vmatpush1.msra.mxu0 0.0
  %199 = vmatprep.subr.mxu0 0.0
  %200 = vmatpush1.msra.mxu0 0.0
  %201 = vmatprep.subr.mxu0 0.0
  %202 = vmatpush1.msra.mxu0 0.0
  %203 = vmatprep.subr.mxu0 0.0
  %204 = vmatpush1.msra.mxu0 0.0
  %205 = vmatprep.subr.mxu0 0.0
  %206 = vmatpush1.msra.mxu0 0.0
  %207 = vmatprep.subr.mxu0 0.0
  %208 = vmatpush1.msra.mxu0 0.0
  %209 = vmatprep.subr.mxu0 0.0
  %210 = vmatpush1.msra.mxu0 0.0
  %211 = vmatprep.subr.mxu0 0.0
  %212 = vmatpush1.msra.mxu0 0.0
  %213 = vmatprep.subr.mxu0 0.0
  %214 = vmatpush1.msra.mxu0 0.0
  %215 = vmatprep.subr.mxu0 0.0
  %216 = vmatpush1.msra.mxu0 0.0
  %217 = vmatprep.subr.mxu0 0.0
  %218 = vmatpush1.msra.mxu0 0.0
  %219 = vmatprep.subr.mxu0 0.0
  %220 = vmatpush1.msra.mxu0 %v173
  %221 = vmatprep.subr.mxu0 0.0
  %222 = vmatpush1.msra.mxu0 %v172
  %223 = vmatprep.subr.mxu0 0.0
  %224 = vmatpush2.msra.mxu0 0.0
  %225 = vmatprep.subr.mxu0 0.0
  %226 = vmatpush2.msra.mxu0 0.0
  %227 = vmatprep.subr.mxu0 0.0
  %228 = vmatpush2.msra.mxu0 0.0
  %229 = vmatprep.subr.mxu0 0.0
  %230 = vmatpush2.msra.mxu0 0.0
  %231 = vmatprep.subr.mxu0 0.0
  %232 = vmatpush2.msra.mxu0 0.0
  %233 = vmatprep.subr.mxu0 0.0
  %234 = vmatpush2.msra.mxu0 0.0
  %235 = vmatprep.subr.mxu0 0.0
  %236 = vmatpush2.msra.mxu0 0.0
  %237 = vmatprep.subr.mxu0 0.0
  %238 = vmatpush2.msra.mxu0 0.0
  %239 = vmatprep.subr.mxu0 0.0
  %240 = vmatpush2.msra.mxu0 0.0
  %241 = vmatprep.subr.mxu0 0.0
  %242 = vmatpush2.msra.mxu0 0.0
  %243 = vmatprep.subr.mxu0 0.0
  %244 = vmatpush2.msra.mxu0 0.0
  %245 = vmatprep.subr.mxu0 0.0
  %246 = vmatpush2.msra.mxu0 0.0
  %247 = vmatprep.subr.mxu0 0.0
  %248 = vmatpush2.msra.mxu0 0.0
  %249 = vmatprep.subr.mxu0 0.0
  %250 = vmatpush2.msra.mxu0 0.0
  %251 = vmatprep.subr.mxu0 0.0
  %252 = vmatpush2.msra.mxu0 0.0
  %253 = vmatprep.subr.mxu0 0.0
  %254 = vmatpush2.msra.mxu0 0.0
  %255 = vmatprep.mubr.f32.mxu0 0.0
  %256 = vmatmul.mubr.f32.gmra.mxu0 %v186
  %v257 = vpop.f32.mrf.mxu0
  %v258 = vadd.f32 %v177, %v257
  %v259 = vpop.f32.mrf.mxu0
  %260 = vmatprep.mubr.f32.mxu0 0.0
  %261 = vmatmul.mubr.f32.gmra.mxu0 %v189
  %v262 = vpop.f32.mrf.mxu0
  %v263 = vadd.f32 %v182, %v262
  %v264 = vpop.f32.mrf.mxu0
  %265 = vdwg.mxu0
  %v266 = vtanh.pop %v258
  %v267 = vtanh.pop %v263
  %269 = vset.pattern.permute.xlu0 0
  %270 = vperm.xlu0 %269, %v63
  %v271 = vpop.permute.xlu0 %270
  %v274 = vsel %vm184, %v62, 0
  %276 = vmatprep.subr.mxu0 0.0
  %277 = vmatpush1.msra.mxu0 0.0
  %278 = vmatprep.subr.mxu0 0.0
  %279 = vmatpush1.msra.mxu0 0.0
  %280 = vmatprep.subr.mxu0 0.0
  %281 = vmatpush1.msra.mxu0 0.0
  %282 = vmatprep.subr.mxu0 0.0
  %283 = vmatpush1.msra.mxu0 0.0
  %284 = vmatprep.subr.mxu0 0.0
  %285 = vmatpush1.msra.mxu0 0.0
  %286 = vmatprep.subr.mxu0 0.0
  %287 = vmatpush1.msra.mxu0 0.0
  %288 = vmatprep.subr.mxu0 0.0
  %289 = vmatpush1.msra.mxu0 0.0
  %290 = vmatprep.subr.mxu0 0.0
  %291 = vmatpush1.msra.mxu0 0.0
  %292 = vmatprep.subr.mxu0 0.0
  %293 = vmatpush1.msra.mxu0 0.0
  %294 = vmatprep.subr.mxu0 0.0
  %295 = vmatpush1.msra.mxu0 0.0
  %296 = vmatprep.subr.mxu0 0.0
  %297 = vmatpush1.msra.mxu0 0.0
  %298 = vmatprep.subr.mxu0 0.0
  %299 = vmatpush1.msra.mxu0 0.0
  %300 = vmatprep.subr.mxu0 0.0
  %301 = vmatpush1.msra.mxu0 0.0
  %302 = vmatprep.subr.mxu0 0.0
  %303 = vmatpush1.msra.mxu0 0.0
  %304 = vmatprep.subr.mxu0 0.0
  %305 = vmatpush1.msra.mxu0 %v267
  %306 = vmatprep.subr.mxu0 0.0
  %307 = vmatpush1.msra.mxu0 %v266
  %308 = vmatprep.subr.mxu0 0.0
  %309 = vmatpush2.msra.mxu0 0.0
  %310 = vmatprep.subr.mxu0 0.0
  %311 = vmatpush2.msra.mxu0 0.0
  %312 = vmatprep.subr.mxu0 0.0
  %313 = vmatpush2.msra.mxu0 0.0
  %314 = vmatprep.subr.mxu0 0.0
  %315 = vmatpush2.msra.mxu0 0.0
  %316 = vmatprep.subr.mxu0 0.0
  %317 = vmatpush2.msra.mxu0 0.0
  %318 = vmatprep.subr.mxu0 0.0
  %319 = vmatpush2.msra.mxu0 0.0
  %320 = vmatprep.subr.mxu0 0.0
  %321 = vmatpush2.msra.mxu0 0.0
  %322 = vmatprep.subr.mxu0 0.0
  %323 = vmatpush2.msra.mxu0 0.0
  %324 = vmatprep.subr.mxu0 0.0
  %325 = vmatpush2.msra.mxu0 0.0
  %326 = vmatprep.subr.mxu0 0.0
  %327 = vmatpush2.msra.mxu0 0.0
  %328 = vmatprep.subr.mxu0 0.0
  %329 = vmatpush2.msra.mxu0 0.0
  %330 = vmatprep.subr.mxu0 0.0
  %331 = vmatpush2.msra.mxu0 0.0
  %332 = vmatprep.subr.mxu0 0.0
  %333 = vmatpush2.msra.mxu0 0.0
  %334 = vmatprep.subr.mxu0 0.0
  %335 = vmatpush2.msra.mxu0 0.0
  %336 = vmatprep.subr.mxu0 0.0
  %337 = vmatpush2.msra.mxu0 0.0
  %338 = vmatprep.subr.mxu0 0.0
  %339 = vmatpush2.msra.mxu0 0.0
  %340 = vmatprep.mubr.f32.mxu0 0.0
  %341 = vmatmul.mubr.f32.gmra.mxu0 %v274
  %v342 = vpop.f32.mrf.mxu0
  %v343 = vadd.f32 %v271, %v342
  %v344 = vpop.f32.mrf.mxu0
  %345 = vdwg.mxu0
  %v346 = vld [vmem:[%s1] sm:$0x3]
  %vm347 = vcmask 15360
  %v349 = vsel %vm347, %v65, 0
  %vm351 = vcmask 1041408
  %v353 = vsel %vm351, %v346, 0
  %355 = vmatprep.subr.mxu0 0.0
  %356 = vmatpush1.msra.mxu0 0.0
  %357 = vmatprep.subr.mxu0 0.0
  %358 = vmatpush1.msra.mxu0 0.0
  %359 = vmatprep.subr.mxu0 0.0
  %360 = vmatpush1.msra.mxu0 0.0
  %361 = vmatprep.subr.mxu0 0.0
  %362 = vmatpush1.msra.mxu0 0.0
  %363 = vmatprep.subr.mxu0 0.0
  %364 = vmatpush1.msra.mxu0 0.0
  %365 = vmatprep.subr.mxu0 0.0
  %366 = vmatpush1.msra.mxu0 0.0
  %367 = vmatprep.subr.mxu0 0.0
  %368 = vmatpush1.msra.mxu0 0.0
  %369 = vmatprep.subr.mxu0 0.0
  %370 = vmatpush1.msra.mxu0 0.0
  %371 = vmatprep.subr.mxu0 0.0
  %372 = vmatpush1.msra.mxu0 0.0
  %373 = vmatprep.subr.mxu0 0.0
  %374 = vmatpush1.msra.mxu0 0.0
  %375 = vmatprep.subr.mxu0 0.0
  %376 = vmatpush1.msra.mxu0 0.0
  %377 = vmatprep.subr.mxu0 0.0
  %378 = vmatpush1.msra.mxu0 0.0
  %379 = vmatprep.subr.mxu0 0.0
  %380 = vmatpush1.msra.mxu0 0.0
  %381 = vmatprep.subr.mxu0 0.0
  %382 = vmatpush1.msra.mxu0 0.0
  %383 = vmatprep.subr.mxu0 0.0
  %384 = vmatpush1.msra.mxu0 0.0
  %385 = vmatprep.subr.mxu0 0.0
  %386 = vmatpush1.msra.mxu0 %v353
  %387 = vmatprep.subr.mxu0 0.0
  %388 = vmatpush2.msra.mxu0 0.0
  %389 = vmatprep.subr.mxu0 0.0
  %390 = vmatpush2.msra.mxu0 0.0
  %391 = vmatprep.subr.mxu0 0.0
  %392 = vmatpush2.msra.mxu0 0.0
  %393 = vmatprep.subr.mxu0 0.0
  %394 = vmatpush2.msra.mxu0 0.0
  %395 = vmatprep.subr.mxu0 0.0
  %396 = vmatpush2.msra.mxu0 0.0
  %397 = vmatprep.subr.mxu0 0.0
  %398 = vmatpush2.msra.mxu0 0.0
  %399 = vmatprep.subr.mxu0 0.0
  %400 = vmatpush2.msra.mxu0 0.0
  %401 = vmatprep.subr.mxu0 0.0
  %402 = vmatpush2.msra.mxu0 0.0
  %403 = vmatprep.subr.mxu0 0.0
  %404 = vmatpush2.msra.mxu0 0.0
  %405 = vmatprep.subr.mxu0 0.0
  %406 = vmatpush2.msra.mxu0 0.0
  %407 = vmatprep.subr.mxu0 0.0
  %408 = vmatpush2.msra.mxu0 0.0
  %409 = vmatprep.subr.mxu0 0.0
  %410 = vmatpush2.msra.mxu0 0.0
  %411 = vmatprep.subr.mxu0 0.0
  %412 = vmatpush2.msra.mxu0 0.0
  %413 = vmatprep.subr.mxu0 0.0
  %414 = vmatpush2.msra.mxu0 0.0
  %415 = vmatprep.subr.mxu0 0.0
  %416 = vmatpush2.msra.mxu0 0.0
  %417 = vmatprep.subr.mxu0 0.0
  %418 = vmatpush2.msra.mxu0 0.0
  %419 = vmatprep.mubr.f32.mxu0 0.0
  %420 = vmatmul.mubr.f32.gmra.mxu0 %v349
  %v421 = vpop.f32.mrf.mxu0
  %v422 = vadd.f32 0.0, %v421
  %v423 = vpop.f32.mrf.mxu0
  %424 = vdwg.mxu0
  %vm425 = vcmask 64512
  %v427 = vsel %vm425, %v64, 0
  %429 = vmatprep.subr.mxu0 0.0
  %430 = vmatpush1.msra.mxu0 0.0
  %431 = vmatprep.subr.mxu0 0.0
  %432 = vmatpush1.msra.mxu0 0.0
  %433 = vmatprep.subr.mxu0 0.0
  %434 = vmatpush1.msra.mxu0 0.0
  %435 = vmatprep.subr.mxu0 0.0
  %436 = vmatpush1.msra.mxu0 0.0
  %437 = vmatprep.subr.mxu0 0.0
  %438 = vmatpush1.msra.mxu0 0.0
  %439 = vmatprep.subr.mxu0 0.0
  %440 = vmatpush1.msra.mxu0 0.0
  %441 = vmatprep.subr.mxu0 0.0
  %442 = vmatpush1.msra.mxu0 0.0
  %443 = vmatprep.subr.mxu0 0.0
  %444 = vmatpush1.msra.mxu0 0.0
  %445 = vmatprep.subr.mxu0 0.0
  %446 = vmatpush1.msra.mxu0 0.0
  %447 = vmatprep.subr.mxu0 0.0
  %448 = vmatpush1.msra.mxu0 0.0
  %449 = vmatprep.subr.mxu0 0.0
  %450 = vmatpush1.msra.mxu0 0.0
  %451 = vmatprep.subr.mxu0 0.0
  %452 = vmatpush1.msra.mxu0 0.0
  %453 = vmatprep.subr.mxu0 0.0
  %454 = vmatpush1.msra.mxu0 0.0
  %455 = vmatprep.subr.mxu0 0.0
  %456 = vmatpush1.msra.mxu0 0.0
  %457 = vmatprep.subr.mxu0 0.0
  %458 = vmatpush1.msra.mxu0 0.0
  %459 = vmatprep.subr.mxu0 0.0
  %460 = vmatpush1.msra.mxu0 %v343
  %461 = vmatprep.subr.mxu0 0.0
  %462 = vmatpush2.msra.mxu0 0.0
  %463 = vmatprep.subr.mxu0 0.0
  %464 = vmatpush2.msra.mxu0 0.0
  %465 = vmatprep.subr.mxu0 0.0
  %466 = vmatpush2.msra.mxu0 0.0
  %467 = vmatprep.subr.mxu0 0.0
  %468 = vmatpush2.msra.mxu0 0.0
  %469 = vmatprep.subr.mxu0 0.0
  %470 = vmatpush2.msra.mxu0 0.0
  %471 = vmatprep.subr.mxu0 0.0
  %472 = vmatpush2.msra.mxu0 0.0
  %473 = vmatprep.subr.mxu0 0.0
  %474 = vmatpush2.msra.mxu0 0.0
  %475 = vmatprep.subr.mxu0 0.0
  %476 = vmatpush2.msra.mxu0 0.0
  %477 = vmatprep.subr.mxu0 0.0
  %478 = vmatpush2.msra.mxu0 0.0
  %479 = vmatprep.subr.mxu0 0.0
  %480 = vmatpush2.msra.mxu0 0.0
  %481 = vmatprep.subr.mxu0 0.0
  %482 = vmatpush2.msra.mxu0 0.0
  %483 = vmatprep.subr.mxu0 0.0
  %484 = vmatpush2.msra.mxu0 0.0
  %485 = vmatprep.subr.mxu0 0.0
  %486 = vmatpush2.msra.mxu0 0.0
  %487 = vmatprep.subr.mxu0 0.0
  %488 = vmatpush2.msra.mxu0 0.0
  %489 = vmatprep.subr.mxu0 0.0
  %490 = vmatpush2.msra.mxu0 0.0
  %491 = vmatprep.subr.mxu0 0.0
  %492 = vmatpush2.msra.mxu0 0.0
  %493 = vmatprep.mubr.f32.mxu0 0.0
  %494 = vmatmul.mubr.f32.gmra.mxu0 %v427
  %v495 = vpop.f32.mrf.mxu0
  %v496 = vadd.f32 %v422, %v495
  %v497 = vpop.f32.mrf.mxu0
  %498 = vdwg.mxu0
  %500 = vset.pattern.permute.xlu0 0
  %501 = vperm.xlu0 %500, %v68
  %v502 = vpop.permute.xlu0 %501
  %505 = vset.pattern.permute.xlu0 0
  %506 = vperm.xlu0 %505, %v69
  %v507 = vpop.permute.xlu0 %506
  %v510 = vsel %vm425, %v66, 0
  %v513 = vsel %vm425, %v67, 0
  %515 = vmatprep.subr.mxu0 0.0
  %516 = vmatpush1.msra.mxu0 0.0
  %517 = vmatprep.subr.mxu0 0.0
  %518 = vmatpush1.msra.mxu0 0.0
  %519 = vmatprep.subr.mxu0 0.0
  %520 = vmatpush1.msra.mxu0 0.0
  %521 = vmatprep.subr.mxu0 0.0
  %522 = vmatpush1.msra.mxu0 0.0
  %523 = vmatprep.subr.mxu0 0.0
  %524 = vmatpush1.msra.mxu0 0.0
  %525 = vmatprep.subr.mxu0 0.0
  %526 = vmatpush1.msra.mxu0 0.0
  %527 = vmatprep.subr.mxu0 0.0
  %528 = vmatpush1.msra.mxu0 0.0
  %529 = vmatprep.subr.mxu0 0.0
  %530 = vmatpush1.msra.mxu0 0.0
  %531 = vmatprep.subr.mxu0 0.0
  %532 = vmatpush1.msra.mxu0 0.0
  %533 = vmatprep.subr.mxu0 0.0
  %534 = vmatpush1.msra.mxu0 0.0
  %535 = vmatprep.subr.mxu0 0.0
  %536 = vmatpush1.msra.mxu0 0.0
  %537 = vmatprep.subr.mxu0 0.0
  %538 = vmatpush1.msra.mxu0 0.0
  %539 = vmatprep.subr.mxu0 0.0
  %540 = vmatpush1.msra.mxu0 0.0
  %541 = vmatprep.subr.mxu0 0.0
  %542 = vmatpush1.msra.mxu0 0.0
  %543 = vmatprep.subr.mxu0 0.0
  %544 = vmatpush1.msra.mxu0 0.0
  %545 = vmatprep.subr.mxu0 0.0
  %546 = vmatpush1.msra.mxu0 %v496
  %547 = vmatprep.subr.mxu0 0.0
  %548 = vmatpush2.msra.mxu0 0.0
  %549 = vmatprep.subr.mxu0 0.0
  %550 = vmatpush2.msra.mxu0 0.0
  %551 = vmatprep.subr.mxu0 0.0
  %552 = vmatpush2.msra.mxu0 0.0
  %553 = vmatprep.subr.mxu0 0.0
  %554 = vmatpush2.msra.mxu0 0.0
  %555 = vmatprep.subr.mxu0 0.0
  %556 = vmatpush2.msra.mxu0 0.0
  %557 = vmatprep.subr.mxu0 0.0
  %558 = vmatpush2.msra.mxu0 0.0
  %559 = vmatprep.subr.mxu0 0.0
  %560 = vmatpush2.msra.mxu0 0.0
  %561 = vmatprep.subr.mxu0 0.0
  %562 = vmatpush2.msra.mxu0 0.0
  %563 = vmatprep.subr.mxu0 0.0
  %564 = vmatpush2.msra.mxu0 0.0
  %565 = vmatprep.subr.mxu0 0.0
  %566 = vmatpush2.msra.mxu0 0.0
  %567 = vmatprep.subr.mxu0 0.0
  %568 = vmatpush2.msra.mxu0 0.0
  %569 = vmatprep.subr.mxu0 0.0
  %570 = vmatpush2.msra.mxu0 0.0
  %571 = vmatprep.subr.mxu0 0.0
  %572 = vmatpush2.msra.mxu0 0.0
  %573 = vmatprep.subr.mxu0 0.0
  %574 = vmatpush2.msra.mxu0 0.0
  %575 = vmatprep.subr.mxu0 0.0
  %576 = vmatpush2.msra.mxu0 0.0
  %577 = vmatprep.subr.mxu0 0.0
  %578 = vmatpush2.msra.mxu0 0.0
  %579 = vmatprep.mubr.f32.mxu0 0.0
  %580 = vmatmul.mubr.f32.gmra.mxu0 %v510
  %v581 = vpop.f32.mrf.mxu0
  %v582 = vadd.f32 %v502, %v581
  %v583 = vpop.f32.mrf.mxu0
  %584 = vmatprep.mubr.f32.mxu0 0.0
  %585 = vmatmul.mubr.f32.gmra.mxu0 %v513
  %v586 = vpop.f32.mrf.mxu0
  %v587 = vadd.f32 %v507, %v586
  %v588 = vpop.f32.mrf.mxu0
  %589 = vdwg.mxu0
  %v590 = vtanh.pop %v582
  %v591 = vtanh.pop %v587
  %593 = vset.pattern.permute.xlu0 0
  %594 = vperm.xlu0 %593, %v72
  %v595 = vpop.permute.xlu0 %594
  %598 = vset.pattern.permute.xlu0 0
  %599 = vperm.xlu0 %598, %v73
  %v600 = vpop.permute.xlu0 %599
  %v603 = vsel %vm184, %v70, 0
  %v606 = vsel %vm184, %v71, 0
  %608 = vmatprep.subr.mxu0 0.0
  %609 = vmatpush1.msra.mxu0 0.0
  %610 = vmatprep.subr.mxu0 0.0
  %611 = vmatpush1.msra.mxu0 0.0
  %612 = vmatprep.subr.mxu0 0.0
  %613 = vmatpush1.msra.mxu0 0.0
  %614 = vmatprep.subr.mxu0 0.0
  %615 = vmatpush1.msra.mxu0 0.0
  %616 = vmatprep.subr.mxu0 0.0
  %617 = vmatpush1.msra.mxu0 0.0
  %618 = vmatprep.subr.mxu0 0.0
  %619 = vmatpush1.msra.mxu0 0.0
  %620 = vmatprep.subr.mxu0 0.0
  %621 = vmatpush1.msra.mxu0 0.0
  %622 = vmatprep.subr.mxu0 0.0
  %623 = vmatpush1.msra.mxu0 0.0
  %624 = vmatprep.subr.mxu0 0.0
  %625 = vmatpush1.msra.mxu0 0.0
  %626 = vmatprep.subr.mxu0 0.0
  %627 = vmatpush1.msra.mxu0 0.0
  %628 = vmatprep.subr.mxu0 0.0
  %629 = vmatpush1.msra.mxu0 0.0
  %630 = vmatprep.subr.mxu0 0.0
  %631 = vmatpush1.msra.mxu0 0.0
  %632 = vmatprep.subr.mxu0 0.0
  %633 = vmatpush1.msra.mxu0 0.0
  %634 = vmatprep.subr.mxu0 0.0
  %635 = vmatpush1.msra.mxu0 0.0
  %636 = vmatprep.subr.mxu0 0.0
  %637 = vmatpush1.msra.mxu0 %v591
  %638 = vmatprep.subr.mxu0 0.0
  %639 = vmatpush1.msra.mxu0 %v590
  %640 = vmatprep.subr.mxu0 0.0
  %641 = vmatpush2.msra.mxu0 0.0
  %642 = vmatprep.subr.mxu0 0.0
  %643 = vmatpush2.msra.mxu0 0.0
  %644 = vmatprep.subr.mxu0 0.0
  %645 = vmatpush2.msra.mxu0 0.0
  %646 = vmatprep.subr.mxu0 0.0
  %647 = vmatpush2.msra.mxu0 0.0
  %648 = vmatprep.subr.mxu0 0.0
  %649 = vmatpush2.msra.mxu0 0.0
  %650 = vmatprep.subr.mxu0 0.0
  %651 = vmatpush2.msra.mxu0 0.0
  %652 = vmatprep.subr.mxu0 0.0
  %653 = vmatpush2.msra.mxu0 0.0
  %654 = vmatprep.subr.mxu0 0.0
  %655 = vmatpush2.msra.mxu0 0.0
  %656 = vmatprep.subr.mxu0 0.0
  %657 = vmatpush2.msra.mxu0 0.0
  %658 = vmatprep.subr.mxu0 0.0
  %659 = vmatpush2.msra.mxu0 0.0
  %660 = vmatprep.subr.mxu0 0.0
  %661 = vmatpush2.msra.mxu0 0.0
  %662 = vmatprep.subr.mxu0 0.0
  %663 = vmatpush2.msra.mxu0 0.0
  %664 = vmatprep.subr.mxu0 0.0
  %665 = vmatpush2.msra.mxu0 0.0
  %666 = vmatprep.subr.mxu0 0.0
  %667 = vmatpush2.msra.mxu0 0.0
  %668 = vmatprep.subr.mxu0 0.0
  %669 = vmatpush2.msra.mxu0 0.0
  %670 = vmatprep.subr.mxu0 0.0
  %671 = vmatpush2.msra.mxu0 0.0
  %672 = vmatprep.mubr.f32.mxu0 0.0
  %673 = vmatmul.mubr.f32.gmra.mxu0 %v603
  %v674 = vpop.f32.mrf.mxu0
  %v675 = vadd.f32 %v595, %v674
  %v676 = vpop.f32.mrf.mxu0
  %677 = vmatprep.mubr.f32.mxu0 0.0
  %678 = vmatmul.mubr.f32.gmra.mxu0 %v606
  %v679 = vpop.f32.mrf.mxu0
  %v680 = vadd.f32 %v600, %v679
  %v681 = vpop.f32.mrf.mxu0
  %682 = vdwg.mxu0
  %v683 = vtanh.pop %v675
  %v684 = vtanh.pop %v680
  %686 = vset.pattern.permute.xlu0 0
  %687 = vperm.xlu0 %686, %v75
  %v688 = vpop.permute.xlu0 %687
  %v691 = vsel %vm184, %v74, 0
  %693 = vmatprep.subr.mxu0 0.0
  %694 = vmatpush1.msra.mxu0 0.0
  %695 = vmatprep.subr.mxu0 0.0
  %696 = vmatpush1.msra.mxu0 0.0
  %697 = vmatprep.subr.mxu0 0.0
  %698 = vmatpush1.msra.mxu0 0.0
  %699 = vmatprep.subr.mxu0 0.0
  %700 = vmatpush1.msra.mxu0 0.0
  %701 = vmatprep.subr.mxu0 0.0
  %702 = vmatpush1.msra.mxu0 0.0
  %703 = vmatprep.subr.mxu0 0.0
  %704 = vmatpush1.msra.mxu0 0.0
  %705 = vmatprep.subr.mxu0 0.0
  %706 = vmatpush1.msra.mxu0 0.0
  %707 = vmatprep.subr.mxu0 0.0
  %708 = vmatpush1.msra.mxu0 0.0
  %709 = vmatprep.subr.mxu0 0.0
  %710 = vmatpush1.msra.mxu0 0.0
  %711 = vmatprep.subr.mxu0 0.0
  %712 = vmatpush1.msra.mxu0 0.0
  %713 = vmatprep.subr.mxu0 0.0
  %714 = vmatpush1.msra.mxu0 0.0
  %715 = vmatprep.subr.mxu0 0.0
  %716 = vmatpush1.msra.mxu0 0.0
  %717 = vmatprep.subr.mxu0 0.0
  %718 = vmatpush1.msra.mxu0 0.0
  %719 = vmatprep.subr.mxu0 0.0
  %720 = vmatpush1.msra.mxu0 0.0
  %721 = vmatprep.subr.mxu0 0.0
  %722 = vmatpush1.msra.mxu0 %v684
  %723 = vmatprep.subr.mxu0 0.0
  %724 = vmatpush1.msra.mxu0 %v683
  %725 = vmatprep.subr.mxu0 0.0
  %726 = vmatpush2.msra.mxu0 0.0
  %727 = vmatprep.subr.mxu0 0.0
  %728 = vmatpush2.msra.mxu0 0.0
  %729 = vmatprep.subr.mxu0 0.0
  %730 = vmatpush2.msra.mxu0 0.0
  %731 = vmatprep.subr.mxu0 0.0
  %732 = vmatpush2.msra.mxu0 0.0
  %733 = vmatprep.subr.mxu0 0.0
  %734 = vmatpush2.msra.mxu0 0.0
  %735 = vmatprep.subr.mxu0 0.0
  %736 = vmatpush2.msra.mxu0 0.0
  %737 = vmatprep.subr.mxu0 0.0
  %738 = vmatpush2.msra.mxu0 0.0
  %739 = vmatprep.subr.mxu0 0.0
  %740 = vmatpush2.msra.mxu0 0.0
  %741 = vmatprep.subr.mxu0 0.0
  %742 = vmatpush2.msra.mxu0 0.0
  %743 = vmatprep.subr.mxu0 0.0
  %744 = vmatpush2.msra.mxu0 0.0
  %745 = vmatprep.subr.mxu0 0.0
  %746 = vmatpush2.msra.mxu0 0.0
  %747 = vmatprep.subr.mxu0 0.0
  %748 = vmatpush2.msra.mxu0 0.0
  %749 = vmatprep.subr.mxu0 0.0
  %750 = vmatpush2.msra.mxu0 0.0
  %751 = vmatprep.subr.mxu0 0.0
  %752 = vmatpush2.msra.mxu0 0.0
  %753 = vmatprep.subr.mxu0 0.0
  %754 = vmatpush2.msra.mxu0 0.0
  %755 = vmatprep.subr.mxu0 0.0
  %756 = vmatpush2.msra.mxu0 0.0
  %757 = vmatprep.mubr.f32.mxu0 0.0
  %758 = vmatmul.mubr.f32.gmra.mxu0 %v691
  %v759 = vpop.f32.mrf.mxu0
  %v760 = vadd.f32 %v688, %v759
  %v761 = vpop.f32.mrf.mxu0
  %762 = vdwg.mxu0
  %v763 = vtanh.pop %v760
  %vm764 = vcmask 11264
  %765 = vst.msk [vmem:[%s16] sm:$0xf] %vm764, %v763
  %s766 = scalar_lea.vmem %s1, 2
  %v767 = vld [vmem:[%s766] sm:$0x3]
  %v769 = vsel %vm351, %v767, 0
  %771 = vmatprep.subr.mxu0 0.0
  %772 = vmatpush1.msra.mxu0 0.0
  %773 = vmatprep.subr.mxu0 0.0
  %774 = vmatpush1.msra.mxu0 0.0
  %775 = vmatprep.subr.mxu0 0.0
  %776 = vmatpush1.msra.mxu0 0.0
  %777 = vmatprep.subr.mxu0 0.0
  %778 = vmatpush1.msra.mxu0 0.0
  %779 = vmatprep.subr.mxu0 0.0
  %780 = vmatpush1.msra.mxu0 0.0
  %781 = vmatprep.subr.mxu0 0.0
  %782 = vmatpush1.msra.mxu0 0.0
  %783 = vmatprep.subr.mxu0 0.0
  %784 = vmatpush1.msra.mxu0 0.0
  %785 = vmatprep.subr.mxu0 0.0
  %786 = vmatpush1.msra.mxu0 0.0
  %787 = vmatprep.subr.mxu0 0.0
  %788 = vmatpush1.msra.mxu0 0.0
  %789 = vmatprep.subr.mxu0 0.0
  %790 = vmatpush1.msra.mxu0 0.0
  %791 = vmatprep.subr.mxu0 0.0
  %792 = vmatpush1.msra.mxu0 0.0
  %793 = vmatprep.subr.mxu0 0.0
  %794 = vmatpush1.msra.mxu0 0.0
  %795 = vmatprep.subr.mxu0 0.0
  %796 = vmatpush1.msra.mxu0 0.0
  %797 = vmatprep.subr.mxu0 0.0
  %798 = vmatpush1.msra.mxu0 0.0
  %799 = vmatprep.subr.mxu0 0.0
  %800 = vmatpush1.msra.mxu0 0.0
  %801 = vmatprep.subr.mxu0 0.0
  %802 = vmatpush1.msra.mxu0 %v769
  %803 = vmatprep.subr.mxu0 0.0
  %804 = vmatpush2.msra.mxu0 0.0
  %805 = vmatprep.subr.mxu0 0.0
  %806 = vmatpush2.msra.mxu0 0.0
  %807 = vmatprep.subr.mxu0 0.0
  %808 = vmatpush2.msra.mxu0 0.0
  %809 = vmatprep.subr.mxu0 0.0
  %810 = vmatpush2.msra.mxu0 0.0
  %811 = vmatprep.subr.mxu0 0.0
  %812 = vmatpush2.msra.mxu0 0.0
  %813 = vmatprep.subr.mxu0 0.0
  %814 = vmatpush2.msra.mxu0 0.0
  %815 = vmatprep.subr.mxu0 0.0
  %816 = vmatpush2.msra.mxu0 0.0
  %817 = vmatprep.subr.mxu0 0.0
  %818 = vmatpush2.msra.mxu0 0.0
  %819 = vmatprep.subr.mxu0 0.0
  %820 = vmatpush2.msra.mxu0 0.0
  %821 = vmatprep.subr.mxu0 0.0
  %822 = vmatpush2.msra.mxu0 0.0
  %823 = vmatprep.subr.mxu0 0.0
  %824 = vmatpush2.msra.mxu0 0.0
  %825 = vmatprep.subr.mxu0 0.0
  %826 = vmatpush2.msra.mxu0 0.0
  %827 = vmatprep.subr.mxu0 0.0
  %828 = vmatpush2.msra.mxu0 0.0
  %829 = vmatprep.subr.mxu0 0.0
  %830 = vmatpush2.msra.mxu0 0.0
  %831 = vmatprep.subr.mxu0 0.0
  %832 = vmatpush2.msra.mxu0 0.0
  %833 = vmatprep.subr.mxu0 0.0
  %834 = vmatpush2.msra.mxu0 0.0
  %835 = vmatprep.mubr.f32.mxu0 0.0
  %836 = vmatmul.mubr.f32.gmra.mxu0 %v349
  %v837 = vpop.f32.mrf.mxu0
  %v838 = vadd.f32 0.0, %v837
  %v839 = vpop.f32.mrf.mxu0
  %840 = vdwg.mxu0
  %841 = vmatprep.subr.mxu0 0.0
  %842 = vmatpush1.msra.mxu0 0.0
  %843 = vmatprep.subr.mxu0 0.0
  %844 = vmatpush1.msra.mxu0 0.0
  %845 = vmatprep.subr.mxu0 0.0
  %846 = vmatpush1.msra.mxu0 0.0
  %847 = vmatprep.subr.mxu0 0.0
  %848 = vmatpush1.msra.mxu0 0.0
  %849 = vmatprep.subr.mxu0 0.0
  %850 = vmatpush1.msra.mxu0 0.0
  %851 = vmatprep.subr.mxu0 0.0
  %852 = vmatpush1.msra.mxu0 0.0
  %853 = vmatprep.subr.mxu0 0.0
  %854 = vmatpush1.msra.mxu0 0.0
  %855 = vmatprep.subr.mxu0 0.0
  %856 = vmatpush1.msra.mxu0 0.0
  %857 = vmatprep.subr.mxu0 0.0
  %858 = vmatpush1.msra.mxu0 0.0
  %859 = vmatprep.subr.mxu0 0.0
  %860 = vmatpush1.msra.mxu0 0.0
  %861 = vmatprep.subr.mxu0 0.0
  %862 = vmatpush1.msra.mxu0 0.0
  %863 = vmatprep.subr.mxu0 0.0
  %864 = vmatpush1.msra.mxu0 0.0
  %865 = vmatprep.subr.mxu0 0.0
  %866 = vmatpush1.msra.mxu0 0.0
  %867 = vmatprep.subr.mxu0 0.0
  %868 = vmatpush1.msra.mxu0 0.0
  %869 = vmatprep.subr.mxu0 0.0
  %870 = vmatpush1.msra.mxu0 0.0
  %871 = vmatprep.subr.mxu0 0.0
  %872 = vmatpush1.msra.mxu0 %v496
  %873 = vmatprep.subr.mxu0 0.0
  %874 = vmatpush2.msra.mxu0 0.0
  %875 = vmatprep.subr.mxu0 0.0
  %876 = vmatpush2.msra.mxu0 0.0
  %877 = vmatprep.subr.mxu0 0.0
  %878 = vmatpush2.msra.mxu0 0.0
  %879 = vmatprep.subr.mxu0 0.0
  %880 = vmatpush2.msra.mxu0 0.0
  %881 = vmatprep.subr.mxu0 0.0
  %882 = vmatpush2.msra.mxu0 0.0
  %883 = vmatprep.subr.mxu0 0.0
  %884 = vmatpush2.msra.mxu0 0.0
  %885 = vmatprep.subr.mxu0 0.0
  %886 = vmatpush2.msra.mxu0 0.0
  %887 = vmatprep.subr.mxu0 0.0
  %888 = vmatpush2.msra.mxu0 0.0
  %889 = vmatprep.subr.mxu0 0.0
  %890 = vmatpush2.msra.mxu0 0.0
  %891 = vmatprep.subr.mxu0 0.0
  %892 = vmatpush2.msra.mxu0 0.0
  %893 = vmatprep.subr.mxu0 0.0
  %894 = vmatpush2.msra.mxu0 0.0
  %895 = vmatprep.subr.mxu0 0.0
  %896 = vmatpush2.msra.mxu0 0.0
  %897 = vmatprep.subr.mxu0 0.0
  %898 = vmatpush2.msra.mxu0 0.0
  %899 = vmatprep.subr.mxu0 0.0
  %900 = vmatpush2.msra.mxu0 0.0
  %901 = vmatprep.subr.mxu0 0.0
  %902 = vmatpush2.msra.mxu0 0.0
  %903 = vmatprep.subr.mxu0 0.0
  %904 = vmatpush2.msra.mxu0 0.0
  %905 = vmatprep.mubr.f32.mxu0 0.0
  %906 = vmatmul.mubr.f32.gmra.mxu0 %v427
  %v907 = vpop.f32.mrf.mxu0
  %v908 = vadd.f32 %v838, %v907
  %v909 = vpop.f32.mrf.mxu0
  %910 = vdwg.mxu0
  %911 = vmatprep.subr.mxu0 0.0
  %912 = vmatpush1.msra.mxu0 0.0
  %913 = vmatprep.subr.mxu0 0.0
  %914 = vmatpush1.msra.mxu0 0.0
  %915 = vmatprep.subr.mxu0 0.0
  %916 = vmatpush1.msra.mxu0 0.0
  %917 = vmatprep.subr.mxu0 0.0
  %918 = vmatpush1.msra.mxu0 0.0
  %919 = vmatprep.subr.mxu0 0.0
  %920 = vmatpush1.msra.mxu0 0.0
  %921 = vmatprep.subr.mxu0 0.0
  %922 = vmatpush1.msra.mxu0 0.0
  %923 = vmatprep.subr.mxu0 0.0
  %924 = vmatpush1.msra.mxu0 0.0
  %925 = vmatprep.subr.mxu0 0.0
  %926 = vmatpush1.msra.mxu0 0.0
  %927 = vmatprep.subr.mxu0 0.0
  %928 = vmatpush1.msra.mxu0 0.0
  %929 = vmatprep.subr.mxu0 0.0
  %930 = vmatpush1.msra.mxu0 0.0
  %931 = vmatprep.subr.mxu0 0.0
  %932 = vmatpush1.msra.mxu0 0.0
  %933 = vmatprep.subr.mxu0 0.0
  %934 = vmatpush1.msra.mxu0 0.0
  %935 = vmatprep.subr.mxu0 0.0
  %936 = vmatpush1.msra.mxu0 0.0
  %937 = vmatprep.subr.mxu0 0.0
  %938 = vmatpush1.msra.mxu0 0.0
  %939 = vmatprep.subr.mxu0 0.0
  %940 = vmatpush1.msra.mxu0 0.0
  %941 = vmatprep.subr.mxu0 0.0
  %942 = vmatpush1.msra.mxu0 %v908
  %943 = vmatprep.subr.mxu0 0.0
  %944 = vmatpush2.msra.mxu0 0.0
  %945 = vmatprep.subr.mxu0 0.0
  %946 = vmatpush2.msra.mxu0 0.0
  %947 = vmatprep.subr.mxu0 0.0
  %948 = vmatpush2.msra.mxu0 0.0
  %949 = vmatprep.subr.mxu0 0.0
  %950 = vmatpush2.msra.mxu0 0.0
  %951 = vmatprep.subr.mxu0 0.0
  %952 = vmatpush2.msra.mxu0 0.0
  %953 = vmatprep.subr.mxu0 0.0
  %954 = vmatpush2.msra.mxu0 0.0
  %955 = vmatprep.subr.mxu0 0.0
  %956 = vmatpush2.msra.mxu0 0.0
  %957 = vmatprep.subr.mxu0 0.0
  %958 = vmatpush2.msra.mxu0 0.0
  %959 = vmatprep.subr.mxu0 0.0
  %960 = vmatpush2.msra.mxu0 0.0
  %961 = vmatprep.subr.mxu0 0.0
  %962 = vmatpush2.msra.mxu0 0.0
  %963 = vmatprep.subr.mxu0 0.0
  %964 = vmatpush2.msra.mxu0 0.0
  %965 = vmatprep.subr.mxu0 0.0
  %966 = vmatpush2.msra.mxu0 0.0
  %967 = vmatprep.subr.mxu0 0.0
  %968 = vmatpush2.msra.mxu0 0.0
  %969 = vmatprep.subr.mxu0 0.0
  %970 = vmatpush2.msra.mxu0 0.0
  %971 = vmatprep.subr.mxu0 0.0
  %972 = vmatpush2.msra.mxu0 0.0
  %973 = vmatprep.subr.mxu0 0.0
  %974 = vmatpush2.msra.mxu0 0.0
  %975 = vmatprep.mubr.f32.mxu0 0.0
  %976 = vmatmul.mubr.f32.gmra.mxu0 %v510
  %v977 = vpop.f32.mrf.mxu0
  %v978 = vadd.f32 %v502, %v977
  %v979 = vpop.f32.mrf.mxu0
  %980 = vmatprep.mubr.f32.mxu0 0.0
  %981 = vmatmul.mubr.f32.gmra.mxu0 %v513
  %v982 = vpop.f32.mrf.mxu0
  %v983 = vadd.f32 %v507, %v982
  %v984 = vpop.f32.mrf.mxu0
  %985 = vdwg.mxu0
  %v986 = vtanh.pop %v978
  %v987 = vtanh.pop %v983
  %988 = vmatprep.subr.mxu0 0.0
  %989 = vmatpush1.msra.mxu0 0.0
  %990 = vmatprep.subr.mxu0 0.0
  %991 = vmatpush1.msra.mxu0 0.0
  %992 = vmatprep.subr.mxu0 0.0
  %993 = vmatpush1.msra.mxu0 0.0
  %994 = vmatprep.subr.mxu0 0.0
  %995 = vmatpush1.msra.mxu0 0.0
  %996 = vmatprep.subr.mxu0 0.0
  %997 = vmatpush1.msra.mxu0 0.0
  %998 = vmatprep.subr.mxu0 0.0
  %999 = vmatpush1.msra.mxu0 0.0
  %1000 = vmatprep.subr.mxu0 0.0
  %1001 = vmatpush1.msra.mxu0 0.0
  %1002 = vmatprep.subr.mxu0 0.0
  %1003 = vmatpush1.msra.mxu0 0.0
  %1004 = vmatprep.subr.mxu0 0.0
  %1005 = vmatpush1.msra.mxu0 0.0
  %1006 = vmatprep.subr.mxu0 0.0
  %1007 = vmatpush1.msra.mxu0 0.0
  %1008 = vmatprep.subr.mxu0 0.0
  %1009 = vmatpush1.msra.mxu0 0.0
  %1010 = vmatprep.subr.mxu0 0.0
  %1011 = vmatpush1.msra.mxu0 0.0
  %1012 = vmatprep.subr.mxu0 0.0
  %1013 = vmatpush1.msra.mxu0 0.0
  %1014 = vmatprep.subr.mxu0 0.0
  %1015 = vmatpush1.msra.mxu0 0.0
  %1016 = vmatprep.subr.mxu0 0.0
  %1017 = vmatpush1.msra.mxu0 %v987
  %1018 = vmatprep.subr.mxu0 0.0
  %1019 = vmatpush1.msra.mxu0 %v986
  %1020 = vmatprep.subr.mxu0 0.0
  %1021 = vmatpush2.msra.mxu0 0.0
  %1022 = vmatprep.subr.mxu0 0.0
  %1023 = vmatpush2.msra.mxu0 0.0
  %1024 = vmatprep.subr.mxu0 0.0
  %1025 = vmatpush2.msra.mxu0 0.0
  %1026 = vmatprep.subr.mxu0 0.0
  %1027 = vmatpush2.msra.mxu0 0.0
  %1028 = vmatprep.subr.mxu0 0.0
  %1029 = vmatpush2.msra.mxu0 0.0
  %1030 = vmatprep.subr.mxu0 0.0
  %1031 = vmatpush2.msra.mxu0 0.0
  %1032 = vmatprep.subr.mxu0 0.0
  %1033 = vmatpush2.msra.mxu0 0.0
  %1034 = vmatprep.subr.mxu0 0.0
  %1035 = vmatpush2.msra.mxu0 0.0
  %1036 = vmatprep.subr.mxu0 0.0
  %1037 = vmatpush2.msra.mxu0 0.0
  %1038 = vmatprep.subr.mxu0 0.0
  %1039 = vmatpush2.msra.mxu0 0.0
  %1040 = vmatprep.subr.mxu0 0.0
  %1041 = vmatpush2.msra.mxu0 0.0
  %1042 = vmatprep.subr.mxu0 0.0
  %1043 = vmatpush2.msra.mxu0 0.0
  %1044 = vmatprep.subr.mxu0 0.0
  %1045 = vmatpush2.msra.mxu0 0.0
  %1046 = vmatprep.subr.mxu0 0.0
  %1047 = vmatpush2.msra.mxu0 0.0
  %1048 = vmatprep.subr.mxu0 0.0
  %1049 = vmatpush2.msra.mxu0 0.0
  %1050 = vmatprep.subr.mxu0 0.0
  %1051 = vmatpush2.msra.mxu0 0.0
  %1052 = vmatprep.mubr.f32.mxu0 0.0
  %1053 = vmatmul.mubr.f32.gmra.mxu0 %v603
  %v1054 = vpop.f32.mrf.mxu0
  %v1055 = vadd.f32 %v595, %v1054
  %v1056 = vpop.f32.mrf.mxu0
  %1057 = vmatprep.mubr.f32.mxu0 0.0
  %1058 = vmatmul.mubr.f32.gmra.mxu0 %v606
  %v1059 = vpop.f32.mrf.mxu0
  %v1060 = vadd.f32 %v600, %v1059
  %v1061 = vpop.f32.mrf.mxu0
  %1062 = vdwg.mxu0
  %v1063 = vtanh.pop %v1055
  %v1064 = vtanh.pop %v1060
  %1065 = vmatprep.subr.mxu0 0.0
  %1066 = vmatpush1.msra.mxu0 0.0
  %1067 = vmatprep.subr.mxu0 0.0
  %1068 = vmatpush1.msra.mxu0 0.0
  %1069 = vmatprep.subr.mxu0 0.0
  %1070 = vmatpush1.msra.mxu0 0.0
  %1071 = vmatprep.subr.mxu0 0.0
  %1072 = vmatpush1.msra.mxu0 0.0
  %1073 = vmatprep.subr.mxu0 0.0
  %1074 = vmatpush1.msra.mxu0 0.0
  %1075 = vmatprep.subr.mxu0 0.0
  %1076 = vmatpush1.msra.mxu0 0.0
  %1077 = vmatprep.subr.mxu0 0.0
  %1078 = vmatpush1.msra.mxu0 0.0
  %1079 = vmatprep.subr.mxu0 0.0
  %1080 = vmatpush1.msra.mxu0 0.0
  %1081 = vmatprep.subr.mxu0 0.0
  %1082 = vmatpush1.msra.mxu0 0.0
  %1083 = vmatprep.subr.mxu0 0.0
  %1084 = vmatpush1.msra.mxu0 0.0
  %1085 = vmatprep.subr.mxu0 0.0
  %1086 = vmatpush1.msra.mxu0 0.0
  %1087 = vmatprep.subr.mxu0 0.0
  %1088 = vmatpush1.msra.mxu0 0.0
  %1089 = vmatprep.subr.mxu0 0.0
  %1090 = vmatpush1.msra.mxu0 0.0
  %1091 = vmatprep.subr.mxu0 0.0
  %1092 = vmatpush1.msra.mxu0 0.0
  %1093 = vmatprep.subr.mxu0 0.0
  %1094 = vmatpush1.msra.mxu0 %v1064
  %1095 = vmatprep.subr.mxu0 0.0
  %1096 = vmatpush1.msra.mxu0 %v1063
  %1097 = vmatprep.subr.mxu0 0.0
  %1098 = vmatpush2.msra.mxu0 0.0
  %1099 = vmatprep.subr.mxu0 0.0
  %1100 = vmatpush2.msra.mxu0 0.0
  %1101 = vmatprep.subr.mxu0 0.0
  %1102 = vmatpush2.msra.mxu0 0.0
  %1103 = vmatprep.subr.mxu0 0.0
  %1104 = vmatpush2.msra.mxu0 0.0
  %1105 = vmatprep.subr.mxu0 0.0
  %1106 = vmatpush2.msra.mxu0 0.0
  %1107 = vmatprep.subr.mxu0 0.0
  %1108 = vmatpush2.msra.mxu0 0.0
  %1109 = vmatprep.subr.mxu0 0.0
  %1110 = vmatpush2.msra.mxu0 0.0
  %1111 = vmatprep.subr.mxu0 0.0
  %1112 = vmatpush2.msra.mxu0 0.0
  %1113 = vmatprep.subr.mxu0 0.0
  %1114 = vmatpush2.msra.mxu0 0.0
  %1115 = vmatprep.subr.mxu0 0.0
  %1116 = vmatpush2.msra.mxu0 0.0
  %1117 = vmatprep.subr.mxu0 0.0
  %1118 = vmatpush2.msra.mxu0 0.0
  %1119 = vmatprep.subr.mxu0 0.0
  %1120 = vmatpush2.msra.mxu0 0.0
  %1121 = vmatprep.subr.mxu0 0.0
  %1122 = vmatpush2.msra.mxu0 0.0
  %1123 = vmatprep.subr.mxu0 0.0
  %1124 = vmatpush2.msra.mxu0 0.0
  %1125 = vmatprep.subr.mxu0 0.0
  %1126 = vmatpush2.msra.mxu0 0.0
  %1127 = vmatprep.subr.mxu0 0.0
  %1128 = vmatpush2.msra.mxu0 0.0
  %1129 = vmatprep.mubr.f32.mxu0 0.0
  %1130 = vmatmul.mubr.f32.gmra.mxu0 %v691
  %v1131 = vpop.f32.mrf.mxu0
  %v1132 = vadd.f32 %v688, %v1131
  %v1133 = vpop.f32.mrf.mxu0
  %1134 = vdwg.mxu0
  %v1135 = vtanh.pop %v1132
  %s1136 = scalar_lea.vmem %s16, 4
  %1137 = vst.msk [vmem:[%s1136] sm:$0xf] %vm764, %v1135
  %s1138 = scalar_lea.vmem %s1, 4
  %v1139 = vld [vmem:[%s1138] sm:$0x3]
  %v1141 = vsel %vm351, %v1139, 0
  %1143 = vmatprep.subr.mxu0 0.0
  %1144 = vmatpush1.msra.mxu0 0.0
  %1145 = vmatprep.subr.mxu0 0.0
  %1146 = vmatpush1.msra.mxu0 0.0
  %1147 = vmatprep.subr.mxu0 0.0
  %1148 = vmatpush1.msra.mxu0 0.0
  %1149 = vmatprep.subr.mxu0 0.0
  %1150 = vmatpush1.msra.mxu0 0.0
  %1151 = vmatprep.subr.mxu0 0.0
  %1152 = vmatpush1.msra.mxu0 0.0
  %1153 = vmatprep.subr.mxu0 0.0
  %1154 = vmatpush1.msra.mxu0 0.0
  %1155 = vmatprep.subr.mxu0 0.0
  %1156 = vmatpush1.msra.mxu0 0.0
  %1157 = vmatprep.subr.mxu0 0.0
  %1158 = vmatpush1.msra.mxu0 0.0
  %1159 = vmatprep.subr.mxu0 0.0
  %1160 = vmatpush1.msra.mxu0 0.0
  %1161 = vmatprep.subr.mxu0 0.0
  %1162 = vmatpush1.msra.mxu0 0.0
  %1163 = vmatprep.subr.mxu0 0.0
  %1164 = vmatpush1.msra.mxu0 0.0
  %1165 = vmatprep.subr.mxu0 0.0
  %1166 = vmatpush1.msra.mxu0 0.0
  %1167 = vmatprep.subr.mxu0 0.0
  %1168 = vmatpush1.msra.mxu0 0.0
  %1169 = vmatprep.subr.mxu0 0.0
  %1170 = vmatpush1.msra.mxu0 0.0
  %1171 = vmatprep.subr.mxu0 0.0
  %1172 = vmatpush1.msra.mxu0 0.0
  %1173 = vmatprep.subr.mxu0 0.0
  %1174 = vmatpush1.msra.mxu0 %v1141
  %1175 = vmatprep.subr.mxu0 0.0
  %1176 = vmatpush2.msra.mxu0 0.0
  %1177 = vmatprep.subr.mxu0 0.0
  %1178 = vmatpush2.msra.mxu0 0.0
  %1179 = vmatprep.subr.mxu0 0.0
  %1180 = vmatpush2.msra.mxu0 0.0
  %1181 = vmatprep.subr.mxu0 0.0
  %1182 = vmatpush2.msra.mxu0 0.0
  %1183 = vmatprep.subr.mxu0 0.0
  %1184 = vmatpush2.msra.mxu0 0.0
  %1185 = vmatprep.subr.mxu0 0.0
  %1186 = vmatpush2.msra.mxu0 0.0
  %1187 = vmatprep.subr.mxu0 0.0
  %1188 = vmatpush2.msra.mxu0 0.0
  %1189 = vmatprep.subr.mxu0 0.0
  %1190 = vmatpush2.msra.mxu0 0.0
  %1191 = vmatprep.subr.mxu0 0.0
  %1192 = vmatpush2.msra.mxu0 0.0
  %1193 = vmatprep.subr.mxu0 0.0
  %1194 = vmatpush2.msra.mxu0 0.0
  %1195 = vmatprep.subr.mxu0 0.0
  %1196 = vmatpush2.msra.mxu0 0.0
  %1197 = vmatprep.subr.mxu0 0.0
  %1198 = vmatpush2.msra.mxu0 0.0
  %1199 = vmatprep.subr.mxu0 0.0
  %1200 = vmatpush2.msra.mxu0 0.0
  %1201 = vmatprep.subr.mxu0 0.0
  %1202 = vmatpush2.msra.mxu0 0.0
  %1203 = vmatprep.subr.mxu0 0.0
  %1204 = vmatpush2.msra.mxu0 0.0
  %1205 = vmatprep.subr.mxu0 0.0
  %1206 = vmatpush2.msra.mxu0 0.0
  %1207 = vmatprep.mubr.f32.mxu0 0.0
  %1208 = vmatmul.mubr.f32.gmra.mxu0 %v349
  %v1209 = vpop.f32.mrf.mxu0
  %v1210 = vadd.f32 0.0, %v1209
  %v1211 = vpop.f32.mrf.mxu0
  %1212 = vdwg.mxu0
  %1213 = vmatprep.subr.mxu0 0.0
  %1214 = vmatpush1.msra.mxu0 0.0
  %1215 = vmatprep.subr.mxu0 0.0
  %1216 = vmatpush1.msra.mxu0 0.0
  %1217 = vmatprep.subr.mxu0 0.0
  %1218 = vmatpush1.msra.mxu0 0.0
  %1219 = vmatprep.subr.mxu0 0.0
  %1220 = vmatpush1.msra.mxu0 0.0
  %1221 = vmatprep.subr.mxu0 0.0
  %1222 = vmatpush1.msra.mxu0 0.0
  %1223 = vmatprep.subr.mxu0 0.0
  %1224 = vmatpush1.msra.mxu0 0.0
  %1225 = vmatprep.subr.mxu0 0.0
  %1226 = vmatpush1.msra.mxu0 0.0
  %1227 = vmatprep.subr.mxu0 0.0
  %1228 = vmatpush1.msra.mxu0 0.0
  %1229 = vmatprep.subr.mxu0 0.0
  %1230 = vmatpush1.msra.mxu0 0.0
  %1231 = vmatprep.subr.mxu0 0.0
  %1232 = vmatpush1.msra.mxu0 0.0
  %1233 = vmatprep.subr.mxu0 0.0
  %1234 = vmatpush1.msra.mxu0 0.0
  %1235 = vmatprep.subr.mxu0 0.0
  %1236 = vmatpush1.msra.mxu0 0.0
  %1237 = vmatprep.subr.mxu0 0.0
  %1238 = vmatpush1.msra.mxu0 0.0
  %1239 = vmatprep.subr.mxu0 0.0
  %1240 = vmatpush1.msra.mxu0 0.0
  %1241 = vmatprep.subr.mxu0 0.0
  %1242 = vmatpush1.msra.mxu0 0.0
  %1243 = vmatprep.subr.mxu0 0.0
  %1244 = vmatpush1.msra.mxu0 %v908
  %1245 = vmatprep.subr.mxu0 0.0
  %1246 = vmatpush2.msra.mxu0 0.0
  %1247 = vmatprep.subr.mxu0 0.0
  %1248 = vmatpush2.msra.mxu0 0.0
  %1249 = vmatprep.subr.mxu0 0.0
  %1250 = vmatpush2.msra.mxu0 0.0
  %1251 = vmatprep.subr.mxu0 0.0
  %1252 = vmatpush2.msra.mxu0 0.0
  %1253 = vmatprep.subr.mxu0 0.0
  %1254 = vmatpush2.msra.mxu0 0.0
  %1255 = vmatprep.subr.mxu0 0.0
  %1256 = vmatpush2.msra.mxu0 0.0
  %1257 = vmatprep.subr.mxu0 0.0
  %1258 = vmatpush2.msra.mxu0 0.0
  %1259 = vmatprep.subr.mxu0 0.0
  %1260 = vmatpush2.msra.mxu0 0.0
  %1261 = vmatprep.subr.mxu0 0.0
  %1262 = vmatpush2.msra.mxu0 0.0
  %1263 = vmatprep.subr.mxu0 0.0
  %1264 = vmatpush2.msra.mxu0 0.0
  %1265 = vmatprep.subr.mxu0 0.0
  %1266 = vmatpush2.msra.mxu0 0.0
  %1267 = vmatprep.subr.mxu0 0.0
  %1268 = vmatpush2.msra.mxu0 0.0
  %1269 = vmatprep.subr.mxu0 0.0
  %1270 = vmatpush2.msra.mxu0 0.0
  %1271 = vmatprep.subr.mxu0 0.0
  %1272 = vmatpush2.msra.mxu0 0.0
  %1273 = vmatprep.subr.mxu0 0.0
  %1274 = vmatpush2.msra.mxu0 0.0
  %1275 = vmatprep.subr.mxu0 0.0
  %1276 = vmatpush2.msra.mxu0 0.0
  %1277 = vmatprep.mubr.f32.mxu0 0.0
  %1278 = vmatmul.mubr.f32.gmra.mxu0 %v427
  %v1279 = vpop.f32.mrf.mxu0
  %v1280 = vadd.f32 %v1210, %v1279
  %v1281 = vpop.f32.mrf.mxu0
  %1282 = vdwg.mxu0
  %1283 = vmatprep.subr.mxu0 0.0
  %1284 = vmatpush1.msra.mxu0 0.0
  %1285 = vmatprep.subr.mxu0 0.0
  %1286 = vmatpush1.msra.mxu0 0.0
  %1287 = vmatprep.subr.mxu0 0.0
  %1288 = vmatpush1.msra.mxu0 0.0
  %1289 = vmatprep.subr.mxu0 0.0
  %1290 = vmatpush1.msra.mxu0 0.0
  %1291 = vmatprep.subr.mxu0 0.0
  %1292 = vmatpush1.msra.mxu0 0.0
  %1293 = vmatprep.subr.mxu0 0.0
  %1294 = vmatpush1.msra.mxu0 0.0
  %1295 = vmatprep.subr.mxu0 0.0
  %1296 = vmatpush1.msra.mxu0 0.0
  %1297 = vmatprep.subr.mxu0 0.0
  %1298 = vmatpush1.msra.mxu0 0.0
  %1299 = vmatprep.subr.mxu0 0.0
  %1300 = vmatpush1.msra.mxu0 0.0
  %1301 = vmatprep.subr.mxu0 0.0
  %1302 = vmatpush1.msra.mxu0 0.0
  %1303 = vmatprep.subr.mxu0 0.0
  %1304 = vmatpush1.msra.mxu0 0.0
  %1305 = vmatprep.subr.mxu0 0.0
  %1306 = vmatpush1.msra.mxu0 0.0
  %1307 = vmatprep.subr.mxu0 0.0
  %1308 = vmatpush1.msra.mxu0 0.0
  %1309 = vmatprep.subr.mxu0 0.0
  %1310 = vmatpush1.msra.mxu0 0.0
  %1311 = vmatprep.subr.mxu0 0.0
  %1312 = vmatpush1.msra.mxu0 0.0
  %1313 = vmatprep.subr.mxu0 0.0
  %1314 = vmatpush1.msra.mxu0 %v1280
  %1315 = vmatprep.subr.mxu0 0.0
  %1316 = vmatpush2.msra.mxu0 0.0
  %1317 = vmatprep.subr.mxu0 0.0
  %1318 = vmatpush2.msra.mxu0 0.0
  %1319 = vmatprep.subr.mxu0 0.0
  %1320 = vmatpush2.msra.mxu0 0.0
  %1321 = vmatprep.subr.mxu0 0.0
  %1322 = vmatpush2.msra.mxu0 0.0
  %1323 = vmatprep.subr.mxu0 0.0
  %1324 = vmatpush2.msra.mxu0 0.0
  %1325 = vmatprep.subr.mxu0 0.0
  %1326 = vmatpush2.msra.mxu0 0.0
  %1327 = vmatprep.subr.mxu0 0.0
  %1328 = vmatpush2.msra.mxu0 0.0
  %1329 = vmatprep.subr.mxu0 0.0
  %1330 = vmatpush2.msra.mxu0 0.0
  %1331 = vmatprep.subr.mxu0 0.0
  %1332 = vmatpush2.msra.mxu0 0.0
  %1333 = vmatprep.subr.mxu0 0.0
  %1334 = vmatpush2.msra.mxu0 0.0
  %1335 = vmatprep.subr.mxu0 0.0
  %1336 = vmatpush2.msra.mxu0 0.0
  %1337 = vmatprep.subr.mxu0 0.0
  %1338 = vmatpush2.msra.mxu0 0.0
  %1339 = vmatprep.subr.mxu0 0.0
  %1340 = vmatpush2.msra.mxu0 0.0
  %1341 = vmatprep.subr.mxu0 0.0
  %1342 = vmatpush2.msra.mxu0 0.0
  %1343 = vmatprep.subr.mxu0 0.0
  %1344 = vmatpush2.msra.mxu0 0.0
  %1345 = vmatprep.subr.mxu0 0.0
  %1346 = vmatpush2.msra.mxu0 0.0
  %1347 = vmatprep.mubr.f32.mxu0 0.0
  %1348 = vmatmul.mubr.f32.gmra.mxu0 %v510
  %v1349 = vpop.f32.mrf.mxu0
  %v1350 = vadd.f32 %v502, %v1349
  %v1351 = vpop.f32.mrf.mxu0
  %1352 = vmatprep.mubr.f32.mxu0 0.0
  %1353 = vmatmul.mubr.f32.gmra.mxu0 %v513
  %v1354 = vpop.f32.mrf.mxu0
  %v1355 = vadd.f32 %v507, %v1354
  %v1356 = vpop.f32.mrf.mxu0
  %1357 = vdwg.mxu0
  %v1358 = vtanh.pop %v1350
  %v1359 = vtanh.pop %v1355
  %1360 = vmatprep.subr.mxu0 0.0
  %1361 = vmatpush1.msra.mxu0 0.0
  %1362 = vmatprep.subr.mxu0 0.0
  %1363 = vmatpush1.msra.mxu0 0.0
  %1364 = vmatprep.subr.mxu0 0.0
  %1365 = vmatpush1.msra.mxu0 0.0
  %1366 = vmatprep.subr.mxu0 0.0
  %1367 = vmatpush1.msra.mxu0 0.0
  %1368 = vmatprep.subr.mxu0 0.0
  %1369 = vmatpush1.msra.mxu0 0.0
  %1370 = vmatprep.subr.mxu0 0.0
  %1371 = vmatpush1.msra.mxu0 0.0
  %1372 = vmatprep.subr.mxu0 0.0
  %1373 = vmatpush1.msra.mxu0 0.0
  %1374 = vmatprep.subr.mxu0 0.0
  %1375 = vmatpush1.msra.mxu0 0.0
  %1376 = vmatprep.subr.mxu0 0.0
  %1377 = vmatpush1.msra.mxu0 0.0
  %1378 = vmatprep.subr.mxu0 0.0
  %1379 = vmatpush1.msra.mxu0 0.0
  %1380 = vmatprep.subr.mxu0 0.0
  %1381 = vmatpush1.msra.mxu0 0.0
  %1382 = vmatprep.subr.mxu0 0.0
  %1383 = vmatpush1.msra.mxu0 0.0
  %1384 = vmatprep.subr.mxu0 0.0
  %1385 = vmatpush1.msra.mxu0 0.0
  %1386 = vmatprep.subr.mxu0 0.0
  %1387 = vmatpush1.msra.mxu0 0.0
  %1388 = vmatprep.subr.mxu0 0.0
  %1389 = vmatpush1.msra.mxu0 %v1359
  %1390 = vmatprep.subr.mxu0 0.0
  %1391 = vmatpush1.msra.mxu0 %v1358
  %1392 = vmatprep.subr.mxu0 0.0
  %1393 = vmatpush2.msra.mxu0 0.0
  %1394 = vmatprep.subr.mxu0 0.0
  %1395 = vmatpush2.msra.mxu0 0.0
  %1396 = vmatprep.subr.mxu0 0.0
  %1397 = vmatpush2.msra.mxu0 0.0
  %1398 = vmatprep.subr.mxu0 0.0
  %1399 = vmatpush2.msra.mxu0 0.0
  %1400 = vmatprep.subr.mxu0 0.0
  %1401 = vmatpush2.msra.mxu0 0.0
  %1402 = vmatprep.subr.mxu0 0.0
  %1403 = vmatpush2.msra.mxu0 0.0
  %1404 = vmatprep.subr.mxu0 0.0
  %1405 = vmatpush2.msra.mxu0 0.0
  %1406 = vmatprep.subr.mxu0 0.0
  %1407 = vmatpush2.msra.mxu0 0.0
  %1408 = vmatprep.subr.mxu0 0.0
  %1409 = vmatpush2.msra.mxu0 0.0
  %1410 = vmatprep.subr.mxu0 0.0
  %1411 = vmatpush2.msra.mxu0 0.0
  %1412 = vmatprep.subr.mxu0 0.0
  %1413 = vmatpush2.msra.mxu0 0.0
  %1414 = vmatprep.subr.mxu0 0.0
  %1415 = vmatpush2.msra.mxu0 0.0
  %1416 = vmatprep.subr.mxu0 0.0
  %1417 = vmatpush2.msra.mxu0 0.0
  %1418 = vmatprep.subr.mxu0 0.0
  %1419 = vmatpush2.msra.mxu0 0.0
  %1420 = vmatprep.subr.mxu0 0.0
  %1421 = vmatpush2.msra.mxu0 0.0
  %1422 = vmatprep.subr.mxu0 0.0
  %1423 = vmatpush2.msra.mxu0 0.0
  %1424 = vmatprep.mubr.f32.mxu0 0.0
  %1425 = vmatmul.mubr.f32.gmra.mxu0 %v603
  %v1426 = vpop.f32.mrf.mxu0
  %v1427 = vadd.f32 %v595, %v1426
  %v1428 = vpop.f32.mrf.mxu0
  %1429 = vmatprep.mubr.f32.mxu0 0.0
  %1430 = vmatmul.mubr.f32.gmra.mxu0 %v606
  %v1431 = vpop.f32.mrf.mxu0
  %v1432 = vadd.f32 %v600, %v1431
  %v1433 = vpop.f32.mrf.mxu0
  %1434 = vdwg.mxu0
  %v1435 = vtanh.pop %v1427
  %v1436 = vtanh.pop %v1432
  %1437 = vmatprep.subr.mxu0 0.0
  %1438 = vmatpush1.msra.mxu0 0.0
  %1439 = vmatprep.subr.mxu0 0.0
  %1440 = vmatpush1.msra.mxu0 0.0
  %1441 = vmatprep.subr.mxu0 0.0
  %1442 = vmatpush1.msra.mxu0 0.0
  %1443 = vmatprep.subr.mxu0 0.0
  %1444 = vmatpush1.msra.mxu0 0.0
  %1445 = vmatprep.subr.mxu0 0.0
  %1446 = vmatpush1.msra.mxu0 0.0
  %1447 = vmatprep.subr.mxu0 0.0
  %1448 = vmatpush1.msra.mxu0 0.0
  %1449 = vmatprep.subr.mxu0 0.0
  %1450 = vmatpush1.msra.mxu0 0.0
  %1451 = vmatprep.subr.mxu0 0.0
  %1452 = vmatpush1.msra.mxu0 0.0
  %1453 = vmatprep.subr.mxu0 0.0
  %1454 = vmatpush1.msra.mxu0 0.0
  %1455 = vmatprep.subr.mxu0 0.0
  %1456 = vmatpush1.msra.mxu0 0.0
  %1457 = vmatprep.subr.mxu0 0.0
  %1458 = vmatpush1.msra.mxu0 0.0
  %1459 = vmatprep.subr.mxu0 0.0
  %1460 = vmatpush1.msra.mxu0 0.0
  %1461 = vmatprep.subr.mxu0 0.0
  %1462 = vmatpush1.msra.mxu0 0.0
  %1463 = vmatprep.subr.mxu0 0.0
  %1464 = vmatpush1.msra.mxu0 0.0
  %1465 = vmatprep.subr.mxu0 0.0
  %1466 = vmatpush1.msra.mxu0 %v1436
  %1467 = vmatprep.subr.mxu0 0.0
  %1468 = vmatpush1.msra.mxu0 %v1435
  %1469 = vmatprep.subr.mxu0 0.0
  %1470 = vmatpush2.msra.mxu0 0.0
  %1471 = vmatprep.subr.mxu0 0.0
  %1472 = vmatpush2.msra.mxu0 0.0
  %1473 = vmatprep.subr.mxu0 0.0
  %1474 = vmatpush2.msra.mxu0 0.0
  %1475 = vmatprep.subr.mxu0 0.0
  %1476 = vmatpush2.msra.mxu0 0.0
  %1477 = vmatprep.subr.mxu0 0.0
  %1478 = vmatpush2.msra.mxu0 0.0
  %1479 = vmatprep.subr.mxu0 0.0
  %1480 = vmatpush2.msra.mxu0 0.0
  %1481 = vmatprep.subr.mxu0 0.0
  %1482 = vmatpush2.msra.mxu0 0.0
  %1483 = vmatprep.subr.mxu0 0.0
  %1484 = vmatpush2.msra.mxu0 0.0
  %1485 = vmatprep.subr.mxu0 0.0
  %1486 = vmatpush2.msra.mxu0 0.0
  %1487 = vmatprep.subr.mxu0 0.0
  %1488 = vmatpush2.msra.mxu0 0.0
  %1489 = vmatprep.subr.mxu0 0.0
  %1490 = vmatpush2.msra.mxu0 0.0
  %1491 = vmatprep.subr.mxu0 0.0
  %1492 = vmatpush2.msra.mxu0 0.0
  %1493 = vmatprep.subr.mxu0 0.0
  %1494 = vmatpush2.msra.mxu0 0.0
  %1495 = vmatprep.subr.mxu0 0.0
  %1496 = vmatpush2.msra.mxu0 0.0
  %1497 = vmatprep.subr.mxu0 0.0
  %1498 = vmatpush2.msra.mxu0 0.0
  %1499 = vmatprep.subr.mxu0 0.0
  %1500 = vmatpush2.msra.mxu0 0.0
  %1501 = vmatprep.mubr.f32.mxu0 0.0
  %1502 = vmatmul.mubr.f32.gmra.mxu0 %v691
  %v1503 = vpop.f32.mrf.mxu0
  %v1504 = vadd.f32 %v688, %v1503
  %v1505 = vpop.f32.mrf.mxu0
  %1506 = vdwg.mxu0
  %v1507 = vtanh.pop %v1504
  %s1508 = scalar_lea.vmem %s16, 8
  %1509 = vst.msk [vmem:[%s1508] sm:$0xf] %vm764, %v1507
  %1510 = vmatprep.subr.mxu0 0.0
  %1511 = vmatpush1.msra.mxu0 0.0
  %1512 = vmatprep.subr.mxu0 0.0
  %1513 = vmatpush1.msra.mxu0 0.0
  %1514 = vmatprep.subr.mxu0 0.0
  %1515 = vmatpush1.msra.mxu0 0.0
  %1516 = vmatprep.subr.mxu0 0.0
  %1517 = vmatpush1.msra.mxu0 0.0
  %1518 = vmatprep.subr.mxu0 0.0
  %1519 = vmatpush1.msra.mxu0 0.0
  %1520 = vmatprep.subr.mxu0 0.0
  %1521 = vmatpush1.msra.mxu0 0.0
  %1522 = vmatprep.subr.mxu0 0.0
  %1523 = vmatpush1.msra.mxu0 0.0
  %1524 = vmatprep.subr.mxu0 0.0
  %1525 = vmatpush1.msra.mxu0 0.0
  %1526 = vmatprep.subr.mxu0 0.0
  %1527 = vmatpush1.msra.mxu0 0.0
  %1528 = vmatprep.subr.mxu0 0.0
  %1529 = vmatpush1.msra.mxu0 0.0
  %1530 = vmatprep.subr.mxu0 0.0
  %1531 = vmatpush1.msra.mxu0 0.0
  %1532 = vmatprep.subr.mxu0 0.0
  %1533 = vmatpush1.msra.mxu0 0.0
  %1534 = vmatprep.subr.mxu0 0.0
  %1535 = vmatpush1.msra.mxu0 0.0
  %1536 = vmatprep.subr.mxu0 0.0
  %1537 = vmatpush1.msra.mxu0 0.0
  %1538 = vmatprep.subr.mxu0 0.0
  %1539 = vmatpush1.msra.mxu0 0.0
  %1540 = vmatprep.subr.mxu0 0.0
  %1541 = vmatpush1.msra.mxu0 %v343
  %1542 = vmatprep.subr.mxu0 0.0
  %1543 = vmatpush2.msra.mxu0 0.0
  %1544 = vmatprep.subr.mxu0 0.0
  %1545 = vmatpush2.msra.mxu0 0.0
  %1546 = vmatprep.subr.mxu0 0.0
  %1547 = vmatpush2.msra.mxu0 0.0
  %1548 = vmatprep.subr.mxu0 0.0
  %1549 = vmatpush2.msra.mxu0 0.0
  %1550 = vmatprep.subr.mxu0 0.0
  %1551 = vmatpush2.msra.mxu0 0.0
  %1552 = vmatprep.subr.mxu0 0.0
  %1553 = vmatpush2.msra.mxu0 0.0
  %1554 = vmatprep.subr.mxu0 0.0
  %1555 = vmatpush2.msra.mxu0 0.0
  %1556 = vmatprep.subr.mxu0 0.0
  %1557 = vmatpush2.msra.mxu0 0.0
  %1558 = vmatprep.subr.mxu0 0.0
  %1559 = vmatpush2.msra.mxu0 0.0
  %1560 = vmatprep.subr.mxu0 0.0
  %1561 = vmatpush2.msra.mxu0 0.0
  %1562 = vmatprep.subr.mxu0 0.0
  %1563 = vmatpush2.msra.mxu0 0.0
  %1564 = vmatprep.subr.mxu0 0.0
  %1565 = vmatpush2.msra.mxu0 0.0
  %1566 = vmatprep.subr.mxu0 0.0
  %1567 = vmatpush2.msra.mxu0 0.0
  %1568 = vmatprep.subr.mxu0 0.0
  %1569 = vmatpush2.msra.mxu0 0.0
  %1570 = vmatprep.subr.mxu0 0.0
  %1571 = vmatpush2.msra.mxu0 0.0
  %1572 = vmatprep.subr.mxu0 0.0
  %1573 = vmatpush2.msra.mxu0 0.0
  %1574 = vmatprep.mubr.f32.mxu0 0.0
  %1575 = vmatmul.mubr.f32.gmra.mxu0 %v510
  %v1576 = vpop.f32.mrf.mxu0
  %v1577 = vadd.f32 %v502, %v1576
  %v1578 = vpop.f32.mrf.mxu0
  %1579 = vmatprep.mubr.f32.mxu0 0.0
  %1580 = vmatmul.mubr.f32.gmra.mxu0 %v513
  %v1581 = vpop.f32.mrf.mxu0
  %v1582 = vadd.f32 %v507, %v1581
  %v1583 = vpop.f32.mrf.mxu0
  %1584 = vdwg.mxu0
  %v1585 = vtanh.pop %v1577
  %v1586 = vtanh.pop %v1582
  %1587 = vmatprep.subr.mxu0 0.0
  %1588 = vmatpush1.msra.mxu0 0.0
  %1589 = vmatprep.subr.mxu0 0.0
  %1590 = vmatpush1.msra.mxu0 0.0
  %1591 = vmatprep.subr.mxu0 0.0
  %1592 = vmatpush1.msra.mxu0 0.0
  %1593 = vmatprep.subr.mxu0 0.0
  %1594 = vmatpush1.msra.mxu0 0.0
  %1595 = vmatprep.subr.mxu0 0.0
  %1596 = vmatpush1.msra.mxu0 0.0
  %1597 = vmatprep.subr.mxu0 0.0
  %1598 = vmatpush1.msra.mxu0 0.0
  %1599 = vmatprep.subr.mxu0 0.0
  %1600 = vmatpush1.msra.mxu0 0.0
  %1601 = vmatprep.subr.mxu0 0.0
  %1602 = vmatpush1.msra.mxu0 0.0
  %1603 = vmatprep.subr.mxu0 0.0
  %1604 = vmatpush1.msra.mxu0 0.0
  %1605 = vmatprep.subr.mxu0 0.0
  %1606 = vmatpush1.msra.mxu0 0.0
  %1607 = vmatprep.subr.mxu0 0.0
  %1608 = vmatpush1.msra.mxu0 0.0
  %1609 = vmatprep.subr.mxu0 0.0
  %1610 = vmatpush1.msra.mxu0 0.0
  %1611 = vmatprep.subr.mxu0 0.0
  %1612 = vmatpush1.msra.mxu0 0.0
  %1613 = vmatprep.subr.mxu0 0.0
  %1614 = vmatpush1.msra.mxu0 0.0
  %1615 = vmatprep.subr.mxu0 0.0
  %1616 = vmatpush1.msra.mxu0 %v1586
  %1617 = vmatprep.subr.mxu0 0.0
  %1618 = vmatpush1.msra.mxu0 %v1585
  %1619 = vmatprep.subr.mxu0 0.0
  %1620 = vmatpush2.msra.mxu0 0.0
  %1621 = vmatprep.subr.mxu0 0.0
  %1622 = vmatpush2.msra.mxu0 0.0
  %1623 = vmatprep.subr.mxu0 0.0
  %1624 = vmatpush2.msra.mxu0 0.0
  %1625 = vmatprep.subr.mxu0 0.0
  %1626 = vmatpush2.msra.mxu0 0.0
  %1627 = vmatprep.subr.mxu0 0.0
  %1628 = vmatpush2.msra.mxu0 0.0
  %1629 = vmatprep.subr.mxu0 0.0
  %1630 = vmatpush2.msra.mxu0 0.0
  %1631 = vmatprep.subr.mxu0 0.0
  %1632 = vmatpush2.msra.mxu0 0.0
  %1633 = vmatprep.subr.mxu0 0.0
  %1634 = vmatpush2.msra.mxu0 0.0
  %1635 = vmatprep.subr.mxu0 0.0
  %1636 = vmatpush2.msra.mxu0 0.0
  %1637 = vmatprep.subr.mxu0 0.0
  %1638 = vmatpush2.msra.mxu0 0.0
  %1639 = vmatprep.subr.mxu0 0.0
  %1640 = vmatpush2.msra.mxu0 0.0
  %1641 = vmatprep.subr.mxu0 0.0
  %1642 = vmatpush2.msra.mxu0 0.0
  %1643 = vmatprep.subr.mxu0 0.0
  %1644 = vmatpush2.msra.mxu0 0.0
  %1645 = vmatprep.subr.mxu0 0.0
  %1646 = vmatpush2.msra.mxu0 0.0
  %1647 = vmatprep.subr.mxu0 0.0
  %1648 = vmatpush2.msra.mxu0 0.0
  %1649 = vmatprep.subr.mxu0 0.0
  %1650 = vmatpush2.msra.mxu0 0.0
  %1651 = vmatprep.mubr.f32.mxu0 0.0
  %1652 = vmatmul.mubr.f32.gmra.mxu0 %v603
  %v1653 = vpop.f32.mrf.mxu0
  %v1654 = vadd.f32 %v595, %v1653
  %v1655 = vpop.f32.mrf.mxu0
  %1656 = vmatprep.mubr.f32.mxu0 0.0
  %1657 = vmatmul.mubr.f32.gmra.mxu0 %v606
  %v1658 = vpop.f32.mrf.mxu0
  %v1659 = vadd.f32 %v600, %v1658
  %v1660 = vpop.f32.mrf.mxu0
  %1661 = vdwg.mxu0
  %v1662 = vtanh.pop %v1654
  %v1663 = vtanh.pop %v1659
  %1664 = vmatprep.subr.mxu0 0.0
  %1665 = vmatpush1.msra.mxu0 0.0
  %1666 = vmatprep.subr.mxu0 0.0
  %1667 = vmatpush1.msra.mxu0 0.0
  %1668 = vmatprep.subr.mxu0 0.0
  %1669 = vmatpush1.msra.mxu0 0.0
  %1670 = vmatprep.subr.mxu0 0.0
  %1671 = vmatpush1.msra.mxu0 0.0
  %1672 = vmatprep.subr.mxu0 0.0
  %1673 = vmatpush1.msra.mxu0 0.0
  %1674 = vmatprep.subr.mxu0 0.0
  %1675 = vmatpush1.msra.mxu0 0.0
  %1676 = vmatprep.subr.mxu0 0.0
  %1677 = vmatpush1.msra.mxu0 0.0
  %1678 = vmatprep.subr.mxu0 0.0
  %1679 = vmatpush1.msra.mxu0 0.0
  %1680 = vmatprep.subr.mxu0 0.0
  %1681 = vmatpush1.msra.mxu0 0.0
  %1682 = vmatprep.subr.mxu0 0.0
  %1683 = vmatpush1.msra.mxu0 0.0
  %1684 = vmatprep.subr.mxu0 0.0
  %1685 = vmatpush1.msra.mxu0 0.0
  %1686 = vmatprep.subr.mxu0 0.0
  %1687 = vmatpush1.msra.mxu0 0.0
  %1688 = vmatprep.subr.mxu0 0.0
  %1689 = vmatpush1.msra.mxu0 0.0
  %1690 = vmatprep.subr.mxu0 0.0
  %1691 = vmatpush1.msra.mxu0 0.0
  %1692 = vmatprep.subr.mxu0 0.0
  %1693 = vmatpush1.msra.mxu0 %v1663
  %1694 = vmatprep.subr.mxu0 0.0
  %1695 = vmatpush1.msra.mxu0 %v1662
  %1696 = vmatprep.subr.mxu0 0.0
  %1697 = vmatpush2.msra.mxu0 0.0
  %1698 = vmatprep.subr.mxu0 0.0
  %1699 = vmatpush2.msra.mxu0 0.0
  %1700 = vmatprep.subr.mxu0 0.0
  %1701 = vmatpush2.msra.mxu0 0.0
  %1702 = vmatprep.subr.mxu0 0.0
  %1703 = vmatpush2.msra.mxu0 0.0
  %1704 = vmatprep.subr.mxu0 0.0
  %1705 = vmatpush2.msra.mxu0 0.0
  %1706 = vmatprep.subr.mxu0 0.0
  %1707 = vmatpush2.msra.mxu0 0.0
  %1708 = vmatprep.subr.mxu0 0.0
  %1709 = vmatpush2.msra.mxu0 0.0
  %1710 = vmatprep.subr.mxu0 0.0
  %1711 = vmatpush2.msra.mxu0 0.0
  %1712 = vmatprep.subr.mxu0 0.0
  %1713 = vmatpush2.msra.mxu0 0.0
  %1714 = vmatprep.subr.mxu0 0.0
  %1715 = vmatpush2.msra.mxu0 0.0
  %1716 = vmatprep.subr.mxu0 0.0
  %1717 = vmatpush2.msra.mxu0 0.0
  %1718 = vmatprep.subr.mxu0 0.0
  %1719 = vmatpush2.msra.mxu0 0.0
  %1720 = vmatprep.subr.mxu0 0.0
  %1721 = vmatpush2.msra.mxu0 0.0
  %1722 = vmatprep.subr.mxu0 0.0
  %1723 = vmatpush2.msra.mxu0 0.0
  %1724 = vmatprep.subr.mxu0 0.0
  %1725 = vmatpush2.msra.mxu0 0.0
  %1726 = vmatprep.subr.mxu0 0.0
  %1727 = vmatpush2.msra.mxu0 0.0
  %1728 = vmatprep.mubr.f32.mxu0 0.0
  %1729 = vmatmul.mubr.f32.gmra.mxu0 %v691
  %v1730 = vpop.f32.mrf.mxu0
  %v1731 = vadd.f32 %v688, %v1730
  %v1732 = vpop.f32.mrf.mxu0
  %1733 = vdwg.mxu0
  %v1734 = vtanh.pop %v1731
  %s1735 = scalar_lea.vmem %s16, 12
  %1736 = vst.msk [vmem:[%s1735] sm:$0xf] %vm764, %v1734
  // Predicated region
  $region66: #{koopman_ae_forward.1} parent=0 // pred_check
    _
  $region67: #{koopman_ae_forward.1} parent=0 // pred_check_branch
    %1738 = sbr.rel (0) target = $region69
  $region68: #{koopman_ae_forward.1} parent=0 // pred_region
    _
  $region69: #{koopman_ae_forward.1} parent=0 // pred_fallthru
    _
  // Predicated region
  $region70: #{koopman_ae_forward.1} parent=0 // pred_check
    _
  $region71: #{koopman_ae_forward.1} parent=0 // pred_check_branch
    %1740 = sbr.rel (0) target = $region73
  $region72: #{koopman_ae_forward.1} parent=0 // pred_region
    _
  $region73: #{koopman_ae_forward.1} parent=0 // pred_fallthru
    _

</llo_original>
